<compile_context>
chip_gen: v7x
topology: tpu7x:2x2x1
jax: 0.10.0
libtpu: 0.0.40
codegen_flags: <defaults>
</compile_context>

<pallas_src>
import jax
import jax.numpy as jnp
from jax.experimental import pallas as pl
from jax.experimental.pallas import tpu as pltpu

# ---------------- synthetic config (small) ----------------
B = 2            # batch
L = 8            # seq_len
E = 64           # embed_dim
H = 4            # num_heads
KVH = 2          # num_kv_heads
D = 16           # head_dim
D2 = D // 2
HID = 4 * E      # mlp hidden
GROUP = H // KVH
NPROJ = (H + 2 * KVH) * D
N = B * L
ROPE_BASE = 10000.0
LN_EPS = 1e-5
ATTN_SCALE = 1.0 / (D ** 0.5)

# Native MXU input dtype on v5e/v6e/v7x; accumulation stays f32 via preferred_element_type.
MXU_DTYPE = jnp.bfloat16


# ---------------- fused Block kernel (one grid step == one batch) ----------------
def _block_kernel(
    x_ref,
    ln1_w_ref, ln1_b_ref,
    qkv_w_ref, qkv_b_ref,
    rot_q_ref, rot_k_ref, cos_q_ref, sin_q_ref, cos_k_ref, sin_k_ref,
    out_w_ref, out_b_ref,
    ln2_w_ref, ln2_b_ref,
    fc1_w_ref, fc1_b_ref,
    fc2_w_ref, fc2_b_ref,
    o_ref,
    attn_buf,                                        # VMEM scratch (L, H*D) f32
):
    f32 = jnp.float32
    x = x_ref[...].astype(f32)                       # (L, E) residual stream

    def layer_norm(t, w_ref_, b_ref_):
        mu = jnp.mean(t, axis=-1, keepdims=True)
        tc = t - mu
        var = jnp.mean(tc * tc, axis=-1, keepdims=True)
        return tc * jax.lax.rsqrt(var + LN_EPS) * w_ref_[...] + b_ref_[...]

    def mxu(a, w, bias=None):
        r = jnp.dot(a.astype(MXU_DTYPE), w.astype(MXU_DTYPE),
                    preferred_element_type=f32)
        return r if bias is None else r + bias

    # ---------------- attention branch ----------------
    h1 = layer_norm(x, ln1_w_ref, ln1_b_ref)          # LN1 fused with QKV matmul
    qkv = mxu(h1, qkv_w_ref[...], qkv_b_ref[...])     # (L, NPROJ) f32

    q = qkv[:, :H * D]                                # (L, H*D)
    k = qkv[:, H * D:H * D + KVH * D]                 # (L, KVH*D)
    v = qkv[:, H * D + KVH * D:]                      # (L, KVH*D)

    # Packed RoPE: rotate-half (with sign) as one block-diagonal MXU dot per tensor;
    # 1/sqrt(D) attention scale is pre-folded into the Q-side cos/sin tables.
    q = q * cos_q_ref[...] + mxu(q, rot_q_ref[...]) * sin_q_ref[...]
    k = (k * cos_k_ref[...] + mxu(k, rot_k_ref[...]) * sin_k_ref[...]).astype(MXU_DTYPE)
    v = v.astype(MXU_DTYPE)

    # GQA attention: one score dot / softmax / PV dot per KV group; the GROUP query
    # heads of a group are stacked along the sublane axis.
    for g in range(KVH):
        qg = jnp.concatenate(
            [q[:, (g * GROUP + j) * D:(g * GROUP + j + 1) * D] for j in range(GROUP)],
            axis=0).astype(MXU_DTYPE)                 # (GROUP*L, D)
        kg = k[:, g * D:(g + 1) * D]                  # (L, D)
        vg = v[:, g * D:(g + 1) * D]                  # (L, D)

        s = jnp.einsum('nd,md->nm', qg, kg,
                       preferred_element_type=f32)    # (GROUP*L, L), already scaled
        s = s - jnp.max(s, axis=-1, keepdims=True)
        p = jnp.exp(s)
        p = p * pl.reciprocal(jnp.sum(p, axis=-1, keepdims=True), approx=True)
        og = jnp.dot(p.astype(MXU_DTYPE), vg,
                     preferred_element_type=f32)      # (GROUP*L, D)

        for j in range(GROUP):
            h = g * GROUP + j
            attn_buf[:, h * D:(h + 1) * D] = og[j * L:(j + 1) * L, :]

    # One out-projection dot + residual.
    res1 = x + out_b_ref[...] + mxu(attn_buf[...], out_w_ref[...])

    # ---------------- mlp branch ----------------
    h2 = layer_norm(res1, ln2_w_ref, ln2_b_ref)       # LN2 fused with FC1+GELU
    hid = jax.nn.gelu(mxu(h2, fc1_w_ref[...], fc1_b_ref[...]), approximate=True)
    out = res1 + mxu(hid, fc2_w_ref[...], fc2_b_ref[...])
    o_ref[...] = out.astype(o_ref.dtype)


def _const_spec(shape):
    nd = len(shape)
    return pl.BlockSpec(shape, lambda b, _nd=nd: (0,) * _nd)


@jax.jit
def block_forward(x, params, tables):
    x2 = x.reshape(N, E)
    operands = (
        x2,
        params["ln1_w"], params["ln1_b"],
        params["qkv_w"], params["qkv_b"],
        tables["rot_q"], tables["rot_k"],
        tables["cos_q"], tables["sin_q"], tables["cos_k"], tables["sin_k"],
        params["out_w"], params["out_b"],
        params["ln2_w"], params["ln2_b"],
        params["fc1_w"], params["fc1_b"],
        params["fc2_w"], params["fc2_b"],
    )
    in_specs = [pl.BlockSpec((L, E), lambda b: (b, 0))] + \
               [_const_spec(a.shape) for a in operands[1:]]
    out2 = pl.pallas_call(
        _block_kernel,
        out_shape=jax.ShapeDtypeStruct((N, E), jnp.float32),
        grid=(B,),
        in_specs=in_specs,
        out_specs=pl.BlockSpec((L, E), lambda b: (b, 0)),
        scratch_shapes=[pltpu.VMEM((L, H * D), jnp.float32)],
        compiler_params=pltpu.CompilerParams(dimension_semantics=("parallel",)),
    )(*operands)
    return out2.reshape(B, L, E)


# ---------------- host-side tables ----------------
def make_rope_cache():
    idxs = jnp.arange(0, D, 2, dtype=jnp.float32) / D
    thetas = 1.0 / (ROPE_BASE ** idxs)                   # (D/2,)
    ms = jnp.arange(L, dtype=jnp.float32)                # (L,)
    mt = ms[:, None] * thetas[None, :]                   # (L, D/2)
    mt = jnp.concatenate([mt, mt], axis=-1)              # 'm d -> m (2 d)'
    return jnp.cos(mt), jnp.sin(mt)                      # (L, D) each


def make_kernel_tables(cos, sin):
    # Signed rotate-half as a permutation matrix: (x @ P)[:, j] == rot_half(x)[:, j].
    eye = jnp.eye(D2, dtype=jnp.float32)
    zero = jnp.zeros((D2, D2), jnp.float32)
    P = jnp.concatenate(
        [jnp.concatenate([zero, eye], axis=1),
         jnp.concatenate([-eye, zero], axis=1)], axis=0)              # (D, D)
    rot_q = jnp.kron(jnp.eye(H, dtype=jnp.float32), P).astype(MXU_DTYPE)     # (H*D, H*D)
    rot_k = jnp.kron(jnp.eye(KVH, dtype=jnp.float32), P).astype(MXU_DTYPE)   # (KVH*D, KVH*D)
    # Per-head-tiled cos/sin tables; attention scale folded into the Q-side tables.
    cos_q = jnp.tile(cos, (1, H)) * ATTN_SCALE            # (L, H*D)
    sin_q = jnp.tile(sin, (1, H)) * ATTN_SCALE
    cos_k = jnp.tile(cos, (1, KVH))                       # (L, KVH*D)
    sin_k = jnp.tile(sin, (1, KVH))
    return dict(rot_q=rot_q, rot_k=rot_k, cos_q=cos_q, sin_q=sin_q,
                cos_k=cos_k, sin_k=sin_k)


def make_params(key):
    ks = jax.random.split(key, 12)

    def nrm(k, shape, scale):
        return scale * jax.random.normal(k, shape, jnp.float32)

    return {
        "ln1_w": 1.0 + 0.1 * jax.random.normal(ks[0], (1, E), jnp.float32),
        "ln1_b": 0.1 * jax.random.normal(ks[1], (1, E), jnp.float32),
        "ln2_w": 1.0 + 0.1 * jax.random.normal(ks[2], (1, E), jnp.float32),
        "ln2_b": 0.1 * jax.random.normal(ks[3], (1, E), jnp.float32),
        # Large matmul weights are stored in bf16 (halved HBM->VMEM DMA, native MXU input).
        "qkv_w": nrm(ks[4], (E, NPROJ), 0.02).astype(MXU_DTYPE),
        "qkv_b": nrm(ks[5], (1, NPROJ), 0.02),
        "out_w": nrm(ks[6], (H * D, E), 0.02).astype(MXU_DTYPE),
        "out_b": nrm(ks[7], (1, E), 0.02),
        "fc1_w": nrm(ks[8], (E, HID), 0.02).astype(MXU_DTYPE),
        "fc1_b": nrm(ks[9], (1, HID), 0.02),
        "fc2_w": nrm(ks[10], (HID, E), 0.02).astype(MXU_DTYPE),
        "fc2_b": nrm(ks[11], (1, E), 0.02),
    }


# ---------------- plain-JAX f32 reference (module semantics) ----------------
def ref_forward(x, params, cos, sin):
    f32 = jnp.float32
    W = {k_: v.astype(f32) for k_, v in params.items()}

    def ln(t, w, b):
        mu = t.mean(-1, keepdims=True)
        var = ((t - mu) ** 2).mean(-1, keepdims=True)
        return (t - mu) * jax.lax.rsqrt(var + LN_EPS) * w + b

    def rope(t):  # [B, Hn, L, D]
        hi = t[..., :D2]
        lo = t[..., D2:]
        rot = jnp.concatenate([-lo, hi], axis=-1)
        return t * cos[None, None] + rot * sin[None, None]

    x2 = x.reshape(N, E)
    h = ln(x2, W["ln1_w"], W["ln1_b"])
    qkv = h @ W["qkv_w"] + W["qkv_b"]
    q = qkv[:, :H * D].reshape(B, L, H, D).transpose(0, 2, 1, 3)
    k = qkv[:, H * D:H * D + KVH * D].reshape(B, L, KVH, D).transpose(0, 2, 1, 3)
    v = qkv[:, H * D + KVH * D:].reshape(B, L, KVH, D).transpose(0, 2, 1, 3)
    q, k = rope(q), rope(k)
    k = jnp.repeat(k, GROUP, axis=1)
    v = jnp.repeat(v, GROUP, axis=1)
    s = jnp.einsum("bhqd,bhkd->bhqk", q, k) * ATTN_SCALE
    p = jax.nn.softmax(s, axis=-1)
    attn = jnp.einsum("bhqk,bhkd->bhqd", p, v)
    attn = attn.transpose(0, 2, 1, 3).reshape(N, H * D)
    res1 = x2 + attn @ W["out_w"] + W["out_b"]
    h = ln(res1, W["ln2_w"], W["ln2_b"])
    h = jax.nn.gelu(h @ W["fc1_w"] + W["fc1_b"], approximate=True)
    out = res1 + h @ W["fc2_w"] + W["fc2_b"]
    return out.reshape(B, L, E)


if __name__ == "__main__":
    key = jax.random.PRNGKey(0)
    k_in, k_p = jax.random.split(key)
    x = jax.random.normal(k_in, (B, L, E), jnp.float32)   # residuals: [batch, seq, embed]
    params = make_params(k_p)
    cos, sin = make_rope_cache()
    tables = make_kernel_tables(cos, sin)

    out = block_forward(x, params, tables)
    out = jax.block_until_ready(out)

    ref = ref_forward(x, params, cos, sin)
    assert out.shape == (B, L, E)
    err = float(jnp.max(jnp.abs(out - ref)))
    # Tolerance covers bf16 MXU inputs + pl.reciprocal(approx=True) vs. the pure-f32 reference.
    assert jnp.allclose(out, ref, atol=1e-2, rtol=1e-2), f"max abs err {err}"
    print("KERNEL_OK")
</pallas_src>

<mosaic_0001>
module attributes {stable_mosaic.version = 11 : i64} {
  func.func @_block_kernel(%arg0: i32, %arg1: memref<8x64xf32, #tpu.memory_space<vmem>>, %arg2: memref<1x64xf32, #tpu.memory_space<vmem>>, %arg3: memref<1x64xf32, #tpu.memory_space<vmem>>, %arg4: memref<64x128xbf16, #tpu.memory_space<vmem>>, %arg5: memref<1x128xf32, #tpu.memory_space<vmem>>, %arg6: memref<64x64xbf16, #tpu.memory_space<vmem>>, %arg7: memref<32x32xbf16, #tpu.memory_space<vmem>>, %arg8: memref<8x64xf32, #tpu.memory_space<vmem>>, %arg9: memref<8x64xf32, #tpu.memory_space<vmem>>, %arg10: memref<8x32xf32, #tpu.memory_space<vmem>>, %arg11: memref<8x32xf32, #tpu.memory_space<vmem>>, %arg12: memref<64x64xbf16, #tpu.memory_space<vmem>>, %arg13: memref<1x64xf32, #tpu.memory_space<vmem>>, %arg14: memref<1x64xf32, #tpu.memory_space<vmem>>, %arg15: memref<1x64xf32, #tpu.memory_space<vmem>>, %arg16: memref<64x256xbf16, #tpu.memory_space<vmem>>, %arg17: memref<1x256xf32, #tpu.memory_space<vmem>>, %arg18: memref<256x64xbf16, #tpu.memory_space<vmem>>, %arg19: memref<1x64xf32, #tpu.memory_space<vmem>>, %arg20: memref<8x64xf32, #tpu.memory_space<vmem>>, %arg21: memref<8x64xf32, #tpu.memory_space<vmem>>) attributes {dimension_semantics = [#tpu.dimension_semantics<parallel>], iteration_bounds = array<i64: 2>, scalar_prefetch = 0 : i64, scratch_operands = 1 : i64, tpu.core_type = #tpu.core_type<tc>, window_params = [{transform_indices = @transform_0, window_bounds = array<i64: 8, 64>}, {pipeline_mode = #tpu.pipeline_mode<synchronous>, transform_indices = @transform_1, window_bounds = array<i64: 1, 64>}, {pipeline_mode = #tpu.pipeline_mode<synchronous>, transform_indices = @transform_2, window_bounds = array<i64: 1, 64>}, {pipeline_mode = #tpu.pipeline_mode<synchronous>, transform_indices = @transform_3, window_bounds = array<i64: 64, 128>}, {pipeline_mode = #tpu.pipeline_mode<synchronous>, transform_indices = @transform_4, window_bounds = array<i64: 1, 128>}, {pipeline_mode = #tpu.pipeline_mode<synchronous>, transform_indices = @transform_5, window_bounds = array<i64: 64, 64>}, {pipeline_mode = #tpu.pipeline_mode<synchronous>, transform_indices = @transform_6, window_bounds = array<i64: 32, 32>}, {pipeline_mode = #tpu.pipeline_mode<synchronous>, transform_indices = @transform_7, window_bounds = array<i64: 8, 64>}, {pipeline_mode = #tpu.pipeline_mode<synchronous>, transform_indices = @transform_8, window_bounds = array<i64: 8, 64>}, {pipeline_mode = #tpu.pipeline_mode<synchronous>, transform_indices = @transform_9, window_bounds = array<i64: 8, 32>}, {pipeline_mode = #tpu.pipeline_mode<synchronous>, transform_indices = @transform_10, window_bounds = array<i64: 8, 32>}, {pipeline_mode = #tpu.pipeline_mode<synchronous>, transform_indices = @transform_11, window_bounds = array<i64: 64, 64>}, {pipeline_mode = #tpu.pipeline_mode<synchronous>, transform_indices = @transform_12, window_bounds = array<i64: 1, 64>}, {pipeline_mode = #tpu.pipeline_mode<synchronous>, transform_indices = @transform_13, window_bounds = array<i64: 1, 64>}, {pipeline_mode = #tpu.pipeline_mode<synchronous>, transform_indices = @transform_14, window_bounds = array<i64: 1, 64>}, {pipeline_mode = #tpu.pipeline_mode<synchronous>, transform_indices = @transform_15, window_bounds = array<i64: 64, 256>}, {pipeline_mode = #tpu.pipeline_mode<synchronous>, transform_indices = @transform_16, window_bounds = array<i64: 1, 256>}, {pipeline_mode = #tpu.pipeline_mode<synchronous>, transform_indices = @transform_17, window_bounds = array<i64: 256, 64>}, {pipeline_mode = #tpu.pipeline_mode<synchronous>, transform_indices = @transform_18, window_bounds = array<i64: 1, 64>}, {transform_indices = @transform_19, window_bounds = array<i64: 8, 64>}]} {
    %c0 = arith.constant 0 : index
    %c0_0 = arith.constant 0 : index
    %0 = vector.load %arg1[%c0, %c0_0] : memref<8x64xf32, #tpu.memory_space<vmem>>, vector<8x64xf32>
    %cst = arith.constant dense<0.000000e+00> : vector<8xf32>
    %1 = vector.multi_reduction <add>, %0, %cst [1] : vector<8x64xf32> to vector<8xf32>
    %2 = vector.shape_cast %1 : vector<8xf32> to vector<8x1xf32>
    %cst_1 = arith.constant 6.400000e+01 : f32
    %3 = vector.broadcast %cst_1 : f32 to vector<8x1xf32>
    %4 = arith.divf %2, %3 : vector<8x1xf32>
    %5 = vector.broadcast %4 : vector<8x1xf32> to vector<8x64xf32>
    %6 = arith.subf %0, %5 : vector<8x64xf32>
    %7 = arith.mulf %6, %6 : vector<8x64xf32>
    %cst_2 = arith.constant dense<0.000000e+00> : vector<8xf32>
    %8 = vector.multi_reduction <add>, %7, %cst_2 [1] : vector<8x64xf32> to vector<8xf32>
    %9 = vector.shape_cast %8 : vector<8xf32> to vector<8x1xf32>
    %cst_3 = arith.constant 6.400000e+01 : f32
    %10 = vector.broadcast %cst_3 : f32 to vector<8x1xf32>
    %11 = arith.divf %9, %10 : vector<8x1xf32>
    %cst_4 = arith.constant 9.99999974E-6 : f32
    %12 = vector.broadcast %cst_4 : f32 to vector<8x1xf32>
    %13 = arith.addf %11, %12 : vector<8x1xf32>
    %14 = math.rsqrt %13 : vector<8x1xf32>
    %15 = vector.broadcast %14 : vector<8x1xf32> to vector<8x64xf32>
    %16 = arith.mulf %6, %15 : vector<8x64xf32>
    %c0_5 = arith.constant 0 : index
    %c0_6 = arith.constant 0 : index
    %17 = vector.load %arg2[%c0_5, %c0_6] : memref<1x64xf32, #tpu.memory_space<vmem>>, vector<1x64xf32>
    %18 = vector.broadcast %17 : vector<1x64xf32> to vector<8x64xf32>
    %19 = arith.mulf %16, %18 : vector<8x64xf32>
    %c0_7 = arith.constant 0 : index
    %c0_8 = arith.constant 0 : index
    %20 = vector.load %arg3[%c0_7, %c0_8] : memref<1x64xf32, #tpu.memory_space<vmem>>, vector<1x64xf32>
    %21 = vector.broadcast %20 : vector<1x64xf32> to vector<8x64xf32>
    %22 = arith.addf %19, %21 : vector<8x64xf32>
    %c0_9 = arith.constant 0 : index
    %c0_10 = arith.constant 0 : index
    %23 = vector.load %arg4[%c0_9, %c0_10] : memref<64x128xbf16, #tpu.memory_space<vmem>>, vector<64x128xbf16>
    %c0_11 = arith.constant 0 : index
    %c0_12 = arith.constant 0 : index
    %24 = vector.load %arg5[%c0_11, %c0_12] : memref<1x128xf32, #tpu.memory_space<vmem>>, vector<1x128xf32>
    %25 = arith.truncf %22 : vector<8x64xf32> to vector<8x64xbf16>
    %cst_13 = arith.constant dense<0.000000e+00> : vector<8x128xf32>
    %26 = tpu.matmul %25, %23, %cst_13 {dimension_numbers = #tpu.dot_dimension_numbers<[1], [0], [0], [1], [0, 0, 1, 1], [], []>} : vector<8x64xbf16>, vector<64x128xbf16>, vector<8x128xf32> -> vector<8x128xf32>
    %27 = vector.broadcast %24 : vector<1x128xf32> to vector<8x128xf32>
    %28 = arith.addf %26, %27 : vector<8x128xf32>
    %29 = vector.extract_strided_slice %28 {offsets = [0, 0], sizes = [8, 64], strides = [1, 1]} : vector<8x128xf32> to vector<8x64xf32>
    %30 = vector.extract_strided_slice %28 {offsets = [0, 64], sizes = [8, 32], strides = [1, 1]} : vector<8x128xf32> to vector<8x32xf32>
    %31 = vector.extract_strided_slice %28 {offsets = [0, 96], sizes = [8, 32], strides = [1, 1]} : vector<8x128xf32> to vector<8x32xf32>
    %c0_14 = arith.constant 0 : index
    %c0_15 = arith.constant 0 : index
    %32 = vector.load %arg8[%c0_14, %c0_15] : memref<8x64xf32, #tpu.memory_space<vmem>>, vector<8x64xf32>
    %33 = arith.mulf %29, %32 : vector<8x64xf32>
    %c0_16 = arith.constant 0 : index
    %c0_17 = arith.constant 0 : index
    %34 = vector.load %arg6[%c0_16, %c0_17] : memref<64x64xbf16, #tpu.memory_space<vmem>>, vector<64x64xbf16>
    %35 = arith.truncf %29 : vector<8x64xf32> to vector<8x64xbf16>
    %cst_18 = arith.constant dense<0.000000e+00> : vector<8x64xf32>
    %36 = tpu.matmul %35, %34, %cst_18 {dimension_numbers = #tpu.dot_dimension_numbers<[1], [0], [0], [1], [0, 0, 1, 1], [], []>} : vector<8x64xbf16>, vector<64x64xbf16>, vector<8x64xf32> -> vector<8x64xf32>
    %c0_19 = arith.constant 0 : index
    %c0_20 = arith.constant 0 : index
    %37 = vector.load %arg9[%c0_19, %c0_20] : memref<8x64xf32, #tpu.memory_space<vmem>>, vector<8x64xf32>
    %38 = arith.mulf %36, %37 : vector<8x64xf32>
    %39 = arith.addf %33, %38 : vector<8x64xf32>
    %c0_21 = arith.constant 0 : index
    %c0_22 = arith.constant 0 : index
    %40 = vector.load %arg10[%c0_21, %c0_22] : memref<8x32xf32, #tpu.memory_space<vmem>>, vector<8x32xf32>
    %41 = arith.mulf %30, %40 : vector<8x32xf32>
    %c0_23 = arith.constant 0 : index
    %c0_24 = arith.constant 0 : index
    %42 = vector.load %arg7[%c0_23, %c0_24] : memref<32x32xbf16, #tpu.memory_space<vmem>>, vector<32x32xbf16>
    %43 = arith.truncf %30 : vector<8x32xf32> to vector<8x32xbf16>
    %cst_25 = arith.constant dense<0.000000e+00> : vector<8x32xf32>
    %44 = tpu.matmul %43, %42, %cst_25 {dimension_numbers = #tpu.dot_dimension_numbers<[1], [0], [0], [1], [0, 0, 1, 1], [], []>} : vector<8x32xbf16>, vector<32x32xbf16>, vector<8x32xf32> -> vector<8x32xf32>
    %c0_26 = arith.constant 0 : index
    %c0_27 = arith.constant 0 : index
    %45 = vector.load %arg11[%c0_26, %c0_27] : memref<8x32xf32, #tpu.memory_space<vmem>>, vector<8x32xf32>
    %46 = arith.mulf %44, %45 : vector<8x32xf32>
    %47 = arith.addf %41, %46 : vector<8x32xf32>
    %48 = arith.truncf %47 : vector<8x32xf32> to vector<8x32xbf16>
    %49 = arith.truncf %31 : vector<8x32xf32> to vector<8x32xbf16>
    %50 = vector.extract_strided_slice %39 {offsets = [0, 0], sizes = [8, 16], strides = [1, 1]} : vector<8x64xf32> to vector<8x16xf32>
    %51 = vector.extract_strided_slice %39 {offsets = [0, 16], sizes = [8, 16], strides = [1, 1]} : vector<8x64xf32> to vector<8x16xf32>
    %52 = tpu.concatenate %50, %51 in 0 : vector<8x16xf32>, vector<8x16xf32> -> vector<16x16xf32>
    %53 = arith.truncf %52 : vector<16x16xf32> to vector<16x16xbf16>
    %54 = vector.extract_strided_slice %48 {offsets = [0, 0], sizes = [8, 16], strides = [1, 1]} : vector<8x32xbf16> to vector<8x16xbf16>
    %55 = vector.extract_strided_slice %49 {offsets = [0, 0], sizes = [8, 16], strides = [1, 1]} : vector<8x32xbf16> to vector<8x16xbf16>
    "tpu.trace_start"() <{level = 10 : i32, message = "nd,md->nm"}> : () -> ()
    %cst_28 = arith.constant dense<0.000000e+00> : vector<16x8xf32>
    %56 = tpu.matmul %53, %54, %cst_28 {dimension_numbers = #tpu.dot_dimension_numbers<[1], [1], [0], [0], [0, 0, 1, 0], [], []>} : vector<16x16xbf16>, vector<8x16xbf16>, vector<16x8xf32> -> vector<16x8xf32>
    "tpu.trace_stop"() : () -> ()
    %cst_29 = arith.constant dense<0xFF800000> : vector<16xf32>
    %57 = vector.multi_reduction <maximumf>, %56, %cst_29 [1] : vector<16x8xf32> to vector<16xf32>
    %58 = vector.shape_cast %57 : vector<16xf32> to vector<16x1xf32>
    %59 = vector.broadcast %58 : vector<16x1xf32> to vector<16x8xf32>
    %60 = arith.subf %56, %59 : vector<16x8xf32>
    %61 = math.exp %60 : vector<16x8xf32>
    %cst_30 = arith.constant dense<0.000000e+00> : vector<16xf32>
    %62 = vector.multi_reduction <add>, %61, %cst_30 [1] : vector<16x8xf32> to vector<16xf32>
    %63 = vector.shape_cast %62 : vector<16xf32> to vector<16x1xf32>
    %64 = tpu.reciprocal %63 {approx = true} : vector<16x1xf32> -> vector<16x1xf32>
    %65 = vector.broadcast %64 : vector<16x1xf32> to vector<16x8xf32>
    %66 = arith.mulf %61, %65 : vector<16x8xf32>
    %67 = arith.truncf %66 : vector<16x8xf32> to vector<16x8xbf16>
    %cst_31 = arith.constant dense<0.000000e+00> : vector<16x16xf32>
    %68 = tpu.matmul %67, %55, %cst_31 {dimension_numbers = #tpu.dot_dimension_numbers<[1], [0], [0], [1], [0, 0, 1, 1], [], []>} : vector<16x8xbf16>, vector<8x16xbf16>, vector<16x16xf32> -> vector<16x16xf32>
    %69 = vector.extract_strided_slice %68 {offsets = [0, 0], sizes = [8, 16], strides = [1, 1]} : vector<16x16xf32> to vector<8x16xf32>
    %c0_32 = arith.constant 0 : index
    %c0_33 = arith.constant 0 : index
    %70 = vector.load %arg21[%c0_32, %c0_33] : memref<8x64xf32, #tpu.memory_space<vmem>>, vector<8x16xf32>
    tpu.vector_store %arg21[%c0_32, %c0_33], %69 {strides = array<i32>} : memref<8x64xf32, #tpu.memory_space<vmem>>, vector<8x16xf32>,
    %71 = vector.extract_strided_slice %68 {offsets = [8, 0], sizes = [8, 16], strides = [1, 1]} : vector<16x16xf32> to vector<8x16xf32>
    %c0_34 = arith.constant 0 : index
    %c16 = arith.constant 16 : index
    %72 = vector.load %arg21[%c0_34, %c16] : memref<8x64xf32, #tpu.memory_space<vmem>>, vector<8x16xf32>
    tpu.vector_store %arg21[%c0_34, %c16], %71 {strides = array<i32>} : memref<8x64xf32, #tpu.memory_space<vmem>>, vector<8x16xf32>,
    %73 = vector.extract_strided_slice %39 {offsets = [0, 32], sizes = [8, 16], strides = [1, 1]} : vector<8x64xf32> to vector<8x16xf32>
    %74 = vector.extract_strided_slice %39 {offsets = [0, 48], sizes = [8, 16], strides = [1, 1]} : vector<8x64xf32> to vector<8x16xf32>
    %75 = tpu.concatenate %73, %74 in 0 : vector<8x16xf32>, vector<8x16xf32> -> vector<16x16xf32>
    %76 = arith.truncf %75 : vector<16x16xf32> to vector<16x16xbf16>
    %77 = vector.extract_strided_slice %48 {offsets = [0, 16], sizes = [8, 16], strides = [1, 1]} : vector<8x32xbf16> to vector<8x16xbf16>
    %78 = vector.extract_strided_slice %49 {offsets = [0, 16], sizes = [8, 16], strides = [1, 1]} : vector<8x32xbf16> to vector<8x16xbf16>
    "tpu.trace_start"() <{level = 10 : i32, message = "nd,md->nm"}> : () -> ()
    %cst_35 = arith.constant dense<0.000000e+00> : vector<16x8xf32>
    %79 = tpu.matmul %76, %77, %cst_35 {dimension_numbers = #tpu.dot_dimension_numbers<[1], [1], [0], [0], [0, 0, 1, 0], [], []>} : vector<16x16xbf16>, vector<8x16xbf16>, vector<16x8xf32> -> vector<16x8xf32>
    "tpu.trace_stop"() : () -> ()
    %cst_36 = arith.constant dense<0xFF800000> : vector<16xf32>
    %80 = vector.multi_reduction <maximumf>, %79, %cst_36 [1] : vector<16x8xf32> to vector<16xf32>
    %81 = vector.shape_cast %80 : vector<16xf32> to vector<16x1xf32>
    %82 = vector.broadcast %81 : vector<16x1xf32> to vector<16x8xf32>
    %83 = arith.subf %79, %82 : vector<16x8xf32>
    %84 = math.exp %83 : vector<16x8xf32>
    %cst_37 = arith.constant dense<0.000000e+00> : vector<16xf32>
    %85 = vector.multi_reduction <add>, %84, %cst_37 [1] : vector<16x8xf32> to vector<16xf32>
    %86 = vector.shape_cast %85 : vector<16xf32> to vector<16x1xf32>
    %87 = tpu.reciprocal %86 {approx = true} : vector<16x1xf32> -> vector<16x1xf32>
    %88 = vector.broadcast %87 : vector<16x1xf32> to vector<16x8xf32>
    %89 = arith.mulf %84, %88 : vector<16x8xf32>
    %90 = arith.truncf %89 : vector<16x8xf32> to vector<16x8xbf16>
    %cst_38 = arith.constant dense<0.000000e+00> : vector<16x16xf32>
    %91 = tpu.matmul %90, %78, %cst_38 {dimension_numbers = #tpu.dot_dimension_numbers<[1], [0], [0], [1], [0, 0, 1, 1], [], []>} : vector<16x8xbf16>, vector<8x16xbf16>, vector<16x16xf32> -> vector<16x16xf32>
    %92 = vector.extract_strided_slice %91 {offsets = [0, 0], sizes = [8, 16], strides = [1, 1]} : vector<16x16xf32> to vector<8x16xf32>
    %c0_39 = arith.constant 0 : index
    %c32 = arith.constant 32 : index
    %93 = vector.load %arg21[%c0_39, %c32] : memref<8x64xf32, #tpu.memory_space<vmem>>, vector<8x16xf32>
    tpu.vector_store %arg21[%c0_39, %c32], %92 {strides = array<i32>} : memref<8x64xf32, #tpu.memory_space<vmem>>, vector<8x16xf32>,
    %94 = vector.extract_strided_slice %91 {offsets = [8, 0], sizes = [8, 16], strides = [1, 1]} : vector<16x16xf32> to vector<8x16xf32>
    %c0_40 = arith.constant 0 : index
    %c48 = arith.constant 48 : index
    %95 = vector.load %arg21[%c0_40, %c48] : memref<8x64xf32, #tpu.memory_space<vmem>>, vector<8x16xf32>
    tpu.vector_store %arg21[%c0_40, %c48], %94 {strides = array<i32>} : memref<8x64xf32, #tpu.memory_space<vmem>>, vector<8x16xf32>,
    %c0_41 = arith.constant 0 : index
    %c0_42 = arith.constant 0 : index
    %96 = vector.load %arg13[%c0_41, %c0_42] : memref<1x64xf32, #tpu.memory_space<vmem>>, vector<1x64xf32>
    %97 = vector.broadcast %96 : vector<1x64xf32> to vector<8x64xf32>
    %98 = arith.addf %0, %97 : vector<8x64xf32>
    %c0_43 = arith.constant 0 : index
    %c0_44 = arith.constant 0 : index
    %99 = vector.load %arg21[%c0_43, %c0_44] : memref<8x64xf32, #tpu.memory_space<vmem>>, vector<8x64xf32>
    %c0_45 = arith.constant 0 : index
    %c0_46 = arith.constant 0 : index
    %100 = vector.load %arg12[%c0_45, %c0_46] : memref<64x64xbf16, #tpu.memory_space<vmem>>, vector<64x64xbf16>
    %101 = arith.truncf %99 : vector<8x64xf32> to vector<8x64xbf16>
    %cst_47 = arith.constant dense<0.000000e+00> : vector<8x64xf32>
    %102 = tpu.matmul %101, %100, %cst_47 {dimension_numbers = #tpu.dot_dimension_numbers<[1], [0], [0], [1], [0, 0, 1, 1], [], []>} : vector<8x64xbf16>, vector<64x64xbf16>, vector<8x64xf32> -> vector<8x64xf32>
    %103 = arith.addf %98, %102 : vector<8x64xf32>
    %cst_48 = arith.constant dense<0.000000e+00> : vector<8xf32>
    %104 = vector.multi_reduction <add>, %103, %cst_48 [1] : vector<8x64xf32> to vector<8xf32>
    %105 = vector.shape_cast %104 : vector<8xf32> to vector<8x1xf32>
    %cst_49 = arith.constant 6.400000e+01 : f32
    %106 = vector.broadcast %cst_49 : f32 to vector<8x1xf32>
    %107 = arith.divf %105, %106 : vector<8x1xf32>
    %108 = vector.broadcast %107 : vector<8x1xf32> to vector<8x64xf32>
    %109 = arith.subf %103, %108 : vector<8x64xf32>
    %110 = arith.mulf %109, %109 : vector<8x64xf32>
    %cst_50 = arith.constant dense<0.000000e+00> : vector<8xf32>
    %111 = vector.multi_reduction <add>, %110, %cst_50 [1] : vector<8x64xf32> to vector<8xf32>
    %112 = vector.shape_cast %111 : vector<8xf32> to vector<8x1xf32>
    %cst_51 = arith.constant 6.400000e+01 : f32
    %113 = vector.broadcast %cst_51 : f32 to vector<8x1xf32>
    %114 = arith.divf %112, %113 : vector<8x1xf32>
    %cst_52 = arith.constant 9.99999974E-6 : f32
    %115 = vector.broadcast %cst_52 : f32 to vector<8x1xf32>
    %116 = arith.addf %114, %115 : vector<8x1xf32>
    %117 = math.rsqrt %116 : vector<8x1xf32>
    %118 = vector.broadcast %117 : vector<8x1xf32> to vector<8x64xf32>
    %119 = arith.mulf %109, %118 : vector<8x64xf32>
    %c0_53 = arith.constant 0 : index
    %c0_54 = arith.constant 0 : index
    %120 = vector.load %arg14[%c0_53, %c0_54] : memref<1x64xf32, #tpu.memory_space<vmem>>, vector<1x64xf32>
    %121 = vector.broadcast %120 : vector<1x64xf32> to vector<8x64xf32>
    %122 = arith.mulf %119, %121 : vector<8x64xf32>
    %c0_55 = arith.constant 0 : index
    %c0_56 = arith.constant 0 : index
    %123 = vector.load %arg15[%c0_55, %c0_56] : memref<1x64xf32, #tpu.memory_space<vmem>>, vector<1x64xf32>
    %124 = vector.broadcast %123 : vector<1x64xf32> to vector<8x64xf32>
    %125 = arith.addf %122, %124 : vector<8x64xf32>
    %c0_57 = arith.constant 0 : index
    %c0_58 = arith.constant 0 : index
    %126 = vector.load %arg16[%c0_57, %c0_58] : memref<64x256xbf16, #tpu.memory_space<vmem>>, vector<64x256xbf16>
    %c0_59 = arith.constant 0 : index
    %c0_60 = arith.constant 0 : index
    %127 = vector.load %arg17[%c0_59, %c0_60] : memref<1x256xf32, #tpu.memory_space<vmem>>, vector<1x256xf32>
    %128 = arith.truncf %125 : vector<8x64xf32> to vector<8x64xbf16>
    %cst_61 = arith.constant dense<0.000000e+00> : vector<8x256xf32>
    %129 = tpu.matmul %128, %126, %cst_61 {dimension_numbers = #tpu.dot_dimension_numbers<[1], [0], [0], [1], [0, 0, 1, 1], [], []>} : vector<8x64xbf16>, vector<64x256xbf16>, vector<8x256xf32> -> vector<8x256xf32>
    %130 = vector.broadcast %127 : vector<1x256xf32> to vector<8x256xf32>
    %131 = arith.addf %129, %130 : vector<8x256xf32>
    %132 = arith.mulf %131, %131 : vector<8x256xf32>
    %133 = arith.mulf %131, %132 : vector<8x256xf32>
    %cst_62 = arith.constant 4.471500e-02 : f32
    %134 = vector.broadcast %cst_62 : f32 to vector<8x256xf32>
    %135 = arith.mulf %134, %133 : vector<8x256xf32>
    %136 = arith.addf %131, %135 : vector<8x256xf32>
    %cst_63 = arith.constant 0.797884583 : f32
    %137 = vector.broadcast %cst_63 : f32 to vector<8x256xf32>
    %138 = arith.mulf %137, %136 : vector<8x256xf32>
    %139 = math.tanh %138 : vector<8x256xf32>
    %cst_64 = arith.constant 1.000000e+00 : f32
    %140 = vector.broadcast %cst_64 : f32 to vector<8x256xf32>
    %141 = arith.addf %140, %139 : vector<8x256xf32>
    %cst_65 = arith.constant 5.000000e-01 : f32
    %142 = vector.broadcast %cst_65 : f32 to vector<8x256xf32>
    %143 = arith.mulf %142, %141 : vector<8x256xf32>
    %144 = arith.mulf %131, %143 : vector<8x256xf32>
    %c0_66 = arith.constant 0 : index
    %c0_67 = arith.constant 0 : index
    %145 = vector.load %arg18[%c0_66, %c0_67] : memref<256x64xbf16, #tpu.memory_space<vmem>>, vector<256x64xbf16>
    %c0_68 = arith.constant 0 : index
    %c0_69 = arith.constant 0 : index
    %146 = vector.load %arg19[%c0_68, %c0_69] : memref<1x64xf32, #tpu.memory_space<vmem>>, vector<1x64xf32>
    %147 = arith.truncf %144 : vector<8x256xf32> to vector<8x256xbf16>
    %cst_70 = arith.constant dense<0.000000e+00> : vector<8x64xf32>
    %148 = tpu.matmul %147, %145, %cst_70 {dimension_numbers = #tpu.dot_dimension_numbers<[1], [0], [0], [1], [0, 0, 1, 1], [], []>} : vector<8x256xbf16>, vector<256x64xbf16>, vector<8x64xf32> -> vector<8x64xf32>
    %149 = vector.broadcast %146 : vector<1x64xf32> to vector<8x64xf32>
    %150 = arith.addf %148, %149 : vector<8x64xf32>
    %151 = arith.addf %103, %150 : vector<8x64xf32>
    %c0_71 = arith.constant 0 : index
    %c0_72 = arith.constant 0 : index
    %152 = vector.load %arg20[%c0_71, %c0_72] : memref<8x64xf32, #tpu.memory_space<vmem>>, vector<8x64xf32>
    tpu.vector_store %arg20[%c0_71, %c0_72], %151 {strides = array<i32>} : memref<8x64xf32, #tpu.memory_space<vmem>>, vector<8x64xf32>,
    return
  }
  func.func @transform_0(%arg0: i32) -> (i32, i32) {
    %c0_i32 = arith.constant 0 : i32
    %c0_i32_0 = arith.constant 0 : i32
    return %arg0, %c0_i32 : i32, i32
  }
  func.func @transform_1(%arg0: i32) -> (i32, i32) {
    %c0_i32 = arith.constant 0 : i32
    %c0_i32_0 = arith.constant 0 : i32
    %c0_i32_1 = arith.constant 0 : i32
    return %c0_i32, %c0_i32_0 : i32, i32
  }
  func.func @transform_2(%arg0: i32) -> (i32, i32) {
    %c0_i32 = arith.constant 0 : i32
    %c0_i32_0 = arith.constant 0 : i32
    %c0_i32_1 = arith.constant 0 : i32
    return %c0_i32, %c0_i32_0 : i32, i32
  }
  func.func @transform_3(%arg0: i32) -> (i32, i32) {
    %c0_i32 = arith.constant 0 : i32
    %c0_i32_0 = arith.constant 0 : i32
    %c0_i32_1 = arith.constant 0 : i32
    return %c0_i32, %c0_i32_0 : i32, i32
  }
  func.func @transform_4(%arg0: i32) -> (i32, i32) {
    %c0_i32 = arith.constant 0 : i32
    %c0_i32_0 = arith.constant 0 : i32
    %c0_i32_1 = arith.constant 0 : i32
    return %c0_i32, %c0_i32_0 : i32, i32
  }
  func.func @transform_5(%arg0: i32) -> (i32, i32) {
    %c0_i32 = arith.constant 0 : i32
    %c0_i32_0 = arith.constant 0 : i32
    %c0_i32_1 = arith.constant 0 : i32
    return %c0_i32, %c0_i32_0 : i32, i32
  }
  func.func @transform_6(%arg0: i32) -> (i32, i32) {
    %c0_i32 = arith.constant 0 : i32
    %c0_i32_0 = arith.constant 0 : i32
    %c0_i32_1 = arith.constant 0 : i32
    return %c0_i32, %c0_i32_0 : i32, i32
  }
  func.func @transform_7(%arg0: i32) -> (i32, i32) {
    %c0_i32 = arith.constant 0 : i32
    %c0_i32_0 = arith.constant 0 : i32
    %c0_i32_1 = arith.constant 0 : i32
    return %c0_i32, %c0_i32_0 : i32, i32
  }
  func.func @transform_8(%arg0: i32) -> (i32, i32) {
    %c0_i32 = arith.constant 0 : i32
    %c0_i32_0 = arith.constant 0 : i32
    %c0_i32_1 = arith.constant 0 : i32
    return %c0_i32, %c0_i32_0 : i32, i32
  }
  func.func @transform_9(%arg0: i32) -> (i32, i32) {
    %c0_i32 = arith.constant 0 : i32
    %c0_i32_0 = arith.constant 0 : i32
    %c0_i32_1 = arith.constant 0 : i32
    return %c0_i32, %c0_i32_0 : i32, i32
  }
  func.func @transform_10(%arg0: i32) -> (i32, i32) {
    %c0_i32 = arith.constant 0 : i32
    %c0_i32_0 = arith.constant 0 : i32
    %c0_i32_1 = arith.constant 0 : i32
    return %c0_i32, %c0_i32_0 : i32, i32
  }
  func.func @transform_11(%arg0: i32) -> (i32, i32) {
    %c0_i32 = arith.constant 0 : i32
    %c0_i32_0 = arith.constant 0 : i32
    %c0_i32_1 = arith.constant 0 : i32
    return %c0_i32, %c0_i32_0 : i32, i32
  }
  func.func @transform_12(%arg0: i32) -> (i32, i32) {
    %c0_i32 = arith.constant 0 : i32
    %c0_i32_0 = arith.constant 0 : i32
    %c0_i32_1 = arith.constant 0 : i32
    return %c0_i32, %c0_i32_0 : i32, i32
  }
  func.func @transform_13(%arg0: i32) -> (i32, i32) {
    %c0_i32 = arith.constant 0 : i32
    %c0_i32_0 = arith.constant 0 : i32
    %c0_i32_1 = arith.constant 0 : i32
    return %c0_i32, %c0_i32_0 : i32, i32
  }
  func.func @transform_14(%arg0: i32) -> (i32, i32) {
    %c0_i32 = arith.constant 0 : i32
    %c0_i32_0 = arith.constant 0 : i32
    %c0_i32_1 = arith.constant 0 : i32
    return %c0_i32, %c0_i32_0 : i32, i32
  }
  func.func @transform_15(%arg0: i32) -> (i32, i32) {
    %c0_i32 = arith.constant 0 : i32
    %c0_i32_0 = arith.constant 0 : i32
    %c0_i32_1 = arith.constant 0 : i32
    return %c0_i32, %c0_i32_0 : i32, i32
  }
  func.func @transform_16(%arg0: i32) -> (i32, i32) {
    %c0_i32 = arith.constant 0 : i32
    %c0_i32_0 = arith.constant 0 : i32
    %c0_i32_1 = arith.constant 0 : i32
    return %c0_i32, %c0_i32_0 : i32, i32
  }
  func.func @transform_17(%arg0: i32) -> (i32, i32) {
    %c0_i32 = arith.constant 0 : i32
    %c0_i32_0 = arith.constant 0 : i32
    %c0_i32_1 = arith.constant 0 : i32
    return %c0_i32, %c0_i32_0 : i32, i32
  }
  func.func @transform_18(%arg0: i32) -> (i32, i32) {
    %c0_i32 = arith.constant 0 : i32
    %c0_i32_0 = arith.constant 0 : i32
    %c0_i32_1 = arith.constant 0 : i32
    return %c0_i32, %c0_i32_0 : i32, i32
  }
  func.func @transform_19(%arg0: i32) -> (i32, i32) {
    %c0_i32 = arith.constant 0 : i32
    %c0_i32_0 = arith.constant 0 : i32
    return %arg0, %c0_i32 : i32, i32
  }
}

</mosaic_0001>

<llo_original>
// kernel: block_forward.1
$region0: #{block_forward.1}
  #allocation0 [shape = 'u32[]', space=smem, size = 0x4, offset = 0x4, fixed_abs, tag = 'smem constant byte address 0x4 - core index']
  #allocation1 [shape = 'u32[144,128]{1,0:T(1,128)}', space=vmem, size = 0x12000, scoped, tag = 'internal scratch']
  #allocation2 [shape = 'f32[8,64]{1,0:T(8,128)}', space=vmem, size = 0x1000, scoped, tag = 'scratch operand']
  %s0 = inlined_call_operand.vmem [shape: f32[16,64], index: 0, kind: input, shape index: {}]
  %s1 = inlined_call_operand.hbm [shape: f32[1,64], index: 1, kind: input, shape index: {}]
  %s2 = inlined_call_operand.hbm [shape: f32[1,64], index: 2, kind: input, shape index: {}]
  %s3 = inlined_call_operand.vmem [shape: bf16[64,128], index: 3, kind: input, shape index: {}]
  %s4 = inlined_call_operand.vmem [shape: f32[1,128], index: 4, kind: input, shape index: {}]
  %s5 = inlined_call_operand.vmem [shape: bf16[64,64], index: 5, kind: input, shape index: {}]
  %s6 = inlined_call_operand.vmem [shape: bf16[32,32], index: 6, kind: input, shape index: {}]
  %s7 = inlined_call_operand.vmem [shape: f32[8,64], index: 7, kind: input, shape index: {}]
  %s8 = inlined_call_operand.vmem [shape: f32[8,64], index: 8, kind: input, shape index: {}]
  %s9 = inlined_call_operand.vmem [shape: f32[8,32], index: 9, kind: input, shape index: {}]
  %s10 = inlined_call_operand.vmem [shape: f32[8,32], index: 10, kind: input, shape index: {}]
  %s11 = inlined_call_operand.vmem [shape: bf16[64,64], index: 11, kind: input, shape index: {}]
  %s12 = inlined_call_operand.vmem [shape: f32[1,64], index: 12, kind: input, shape index: {}]
  %s13 = inlined_call_operand.hbm [shape: f32[1,64], index: 13, kind: input, shape index: {}]
  %s14 = inlined_call_operand.hbm [shape: f32[1,64], index: 14, kind: input, shape index: {}]
  %s15 = inlined_call_operand.vmem [shape: bf16[64,256], index: 15, kind: input, shape index: {}]
  %s16 = inlined_call_operand.vmem [shape: f32[1,256], index: 16, kind: input, shape index: {}]
  %s17 = inlined_call_operand.vmem [shape: bf16[256,64], index: 17, kind: input, shape index: {}]
  %s18 = inlined_call_operand.hbm [shape: f32[1,64], index: 18, kind: input, shape index: {}]
  %s19 = inlined_call_operand.hbm [shape: f32[16,64], index: 19, kind: output, shape index: {}]
  %s20 = sld [smem:[#allocation0]]
  $region129: #{block_forward.1} parent=0
    _
  %s22 = ssub.s32 1, %s20
  %s23 = scalar_select 0, %s22, %s20
  $region1: #{block_forward.1} parent=0
    #allocation3 [shape = 'u8[512]{0}', space=vmem, size = 0x400, scoped, tag = 'input window, operand 1, single buffered']
    #allocation4 [shape = 's32[2]{0}', space=sflag, size = 0x8, scoped, tag = 'scoped memory for block_forward.1']
    #allocation5 [shape = 's32[2]{0}', space=sflag, size = 0x8, scoped, tag = 'scoped memory for block_forward.1']
    #allocation6 [shape = 'u8[512]{0}', space=vmem, size = 0x400, scoped, tag = 'input window, operand 2, single buffered']
    #allocation7 [shape = 's32[1]{0}', space=sflag, size = 0x4, scoped, tag = 'scoped memory for block_forward.1']
    #allocation8 [shape = 'u8[512]{0}', space=vmem, size = 0x400, scoped, tag = 'input window, operand 13, single buffered']
    #allocation9 [shape = 'u8[512]{0}', space=vmem, size = 0x400, scoped, tag = 'input window, operand 14, single buffered']
    #allocation10 [shape = 's32[1]{0}', space=sflag, size = 0x4, scoped, tag = 'scoped memory for block_forward.1']
    #allocation11 [shape = 'u8[512]{0}', space=vmem, size = 0x400, scoped, tag = 'input window, operand 18, single buffered']
    #allocation12 [shape = 'u8[8192]{0}', space=vmem, size = 0x2000, scoped, tag = 'output window, operand 0']
    %24 = vsyncpa [#allocation4], 0
    %25 = vsyncpa [#allocation7], 0
    %26 = vsyncpa [#allocation10], 0
    %27 = vsyncpa [#allocation5], 0
    %s28 = scalar_lea.sflag [#allocation5], 1
    %29 = vsyncpa %s28, 0
    loop: start=0, step=1, limit=4
    $region2: #{block_forward.1} parent=1 // loop_pre_header
      _
    $region3: #{block_forward.1} parent=1 // loop_header
      %s31 = sphi 0, %s35
      %p32 = scmp.ge.s32.totalorder %s31, 4
      %s41 = sphi 0, %s43
      %s44 = sphi 0, %s41
      %s45 = sphi 0, %s44
      %s61 = sphi 0, %s45
      %s65 = sphi 0, %s65
      %s67 = sphi 0, %s65
      %s68 = sphi 0, %s67
      %s82 = sphi 0, %s68
      %s86 = sphi 0, %s86
      %s88 = sphi 0, %s86
      %s89 = sphi 0, %s88
      %s103 = sphi 0, %s89
      %s107 = sphi 0, %s107
      %s109 = sphi 0, %s107
      %s110 = sphi 0, %s109
      %s124 = sphi 0, %s110
      %s128 = sphi 0, %s128
      %s130 = sphi 0, %s128
      %s131 = sphi 0, %s130
      %s145 = sphi 0, %s131
      %s149 = sphi 0, %s149
      %s151 = sphi 0, %s149
      %s152 = sphi 0, %s151
      %s166 = sphi 0, %s152
      %s170 = sphi 0, %s170
      %s172 = sphi 0, %s170
      %s173 = sphi 0, %s172
      %s187 = sphi 0, %s173
      %s191 = sphi 0, %s191
      %s193 = sphi 0, %s191
      %s194 = sphi 0, %s193
      %s208 = sphi 0, %s194
      %s212 = sphi 0, %s212
      %s214 = sphi 0, %s212
      %s215 = sphi 0, %s214
      %s229 = sphi 0, %s215
      %s233 = sphi 0, %s233
      %s235 = sphi 0, %s233
      %s236 = sphi 0, %s235
      %s250 = sphi 0, %s236
      %s254 = sphi 0, %s254
      %s256 = sphi 0, %s254
      %s257 = sphi 0, %s256
      %s271 = sphi 0, %s257
      %s275 = sphi 0, %s275
      %s277 = sphi 0, %s275
      %s278 = sphi 0, %s277
      %s292 = sphi 0, %s278
      %s296 = sphi 0, %s296
      %s298 = sphi 0, %s296
      %s299 = sphi 0, %s298
      %s313 = sphi 0, %s299
      %s317 = sphi 0, %s317
      %s319 = sphi 0, %s317
      %s320 = sphi 0, %s319
      %s334 = sphi 0, %s320
      %s338 = sphi 0, %s338
      %s340 = sphi 0, %s338
      %s341 = sphi 0, %s340
      %s355 = sphi 0, %s341
      %s359 = sphi 0, %s359
      %s361 = sphi 0, %s359
      %s362 = sphi 0, %s361
      %s376 = sphi 0, %s362
      %s380 = sphi 0, %s380
      %s382 = sphi 0, %s380
      %s383 = sphi 0, %s382
      %s397 = sphi 0, %s383
      %s401 = sphi 0, %s401
      %s403 = sphi 0, %s401
      %s404 = sphi 0, %s403
      %s418 = sphi 0, %s404
      %s422 = sphi 0, %s422
      %s424 = sphi 0, %s422
      %s425 = sphi 0, %s424
      %s439 = sphi 0, %s425
      %s445 = sphi 0, %s447
      %s448 = sphi 0, %s445
      %s449 = sphi 0, %s448
      %s465 = sphi 0, %s449
    $region4: #{block_forward.1} parent=1 // loop_header_branch
      %34 = sbr.rel (%p32) target = $region8
    $region5: #{block_forward.1} parent=1 // loop_body
      %s36 = ssub.s32 %s31, 1
      %s37 = ssub.s32 %s31, 2
      %s38 = sadd.s32 %s31, 1
      %s39 = ssub.s32 %s31, %s38
      %p40 = scmp.eq.s32.totalorder %s39, 0
      %s42 = sadd.s32 %s41, 1
      %s43 = scalar_select %p40, %s41, %s42
      %p46 = pneg %p40
      %p47 = scmp.eq.s32.totalorder %s31, 1
      %p48 = por %p46, %p47
      %p49 = scmp.ne.s32.totalorder %s41, %s44
      %p50 = scmp.eq.s32.totalorder %s31, 0
      %p51 = por %p49, %p50
      %p52 = scmp.ne.s32.totalorder %s41, %s44
      %p53 = scmp.eq.s32.totalorder %s36, 1
      %p54 = por %p52, %p53
      %p55 = scmp.ne.s32.totalorder %s44, %s45
      %p56 = scmp.eq.s32.totalorder %s36, 0
      %p57 = por %p55, %p56
      %p58 = scmp.ne.s32.totalorder %s44, %s45
      %p59 = scmp.eq.s32.totalorder %s37, 1
      %p60 = por %p58, %p59
      %p62 = scmp.ne.s32.totalorder %s45, %s61
      %p63 = scmp.eq.s32.totalorder %s37, 0
      %p64 = por %p62, %p63
      %s66 = sadd.s32 %s65, 1
      %p69 = scmp.eq.s32.totalorder %s31, 1
      %p70 = scmp.ne.s32.totalorder %s65, %s67
      %p71 = scmp.eq.s32.totalorder %s31, 0
      %p72 = por %p70, %p71
      %p73 = scmp.ne.s32.totalorder %s65, %s67
      %p74 = scmp.eq.s32.totalorder %s36, 1
      %p75 = por %p73, %p74
      %p76 = scmp.ne.s32.totalorder %s67, %s68
      %p77 = scmp.eq.s32.totalorder %s36, 0
      %p78 = por %p76, %p77
      %p79 = scmp.ne.s32.totalorder %s67, %s68
      %p80 = scmp.eq.s32.totalorder %s37, 1
      %p81 = por %p79, %p80
      %p83 = scmp.ne.s32.totalorder %s68, %s82
      %p84 = scmp.eq.s32.totalorder %s37, 0
      %p85 = por %p83, %p84
      %s87 = sadd.s32 %s86, 1
      %p90 = scmp.eq.s32.totalorder %s31, 1
      %p91 = scmp.ne.s32.totalorder %s86, %s88
      %p92 = scmp.eq.s32.totalorder %s31, 0
      %p93 = por %p91, %p92
      %p94 = scmp.ne.s32.totalorder %s86, %s88
      %p95 = scmp.eq.s32.totalorder %s36, 1
      %p96 = por %p94, %p95
      %p97 = scmp.ne.s32.totalorder %s88, %s89
      %p98 = scmp.eq.s32.totalorder %s36, 0
      %p99 = por %p97, %p98
      %p100 = scmp.ne.s32.totalorder %s88, %s89
      %p101 = scmp.eq.s32.totalorder %s37, 1
      %p102 = por %p100, %p101
      %p104 = scmp.ne.s32.totalorder %s89, %s103
      %p105 = scmp.eq.s32.totalorder %s37, 0
      %p106 = por %p104, %p105
      %s108 = sadd.s32 %s107, 1
      %p111 = scmp.eq.s32.totalorder %s31, 1
      %p112 = scmp.ne.s32.totalorder %s107, %s109
      %p113 = scmp.eq.s32.totalorder %s31, 0
      %p114 = por %p112, %p113
      %p115 = scmp.ne.s32.totalorder %s107, %s109
      %p116 = scmp.eq.s32.totalorder %s36, 1
      %p117 = por %p115, %p116
      %p118 = scmp.ne.s32.totalorder %s109, %s110
      %p119 = scmp.eq.s32.totalorder %s36, 0
      %p120 = por %p118, %p119
      %p121 = scmp.ne.s32.totalorder %s109, %s110
      %p122 = scmp.eq.s32.totalorder %s37, 1
      %p123 = por %p121, %p122
      %p125 = scmp.ne.s32.totalorder %s110, %s124
      %p126 = scmp.eq.s32.totalorder %s37, 0
      %p127 = por %p125, %p126
      %s129 = sadd.s32 %s128, 1
      %p132 = scmp.eq.s32.totalorder %s31, 1
      %p133 = scmp.ne.s32.totalorder %s128, %s130
      %p134 = scmp.eq.s32.totalorder %s31, 0
      %p135 = por %p133, %p134
      %p136 = scmp.ne.s32.totalorder %s128, %s130
      %p137 = scmp.eq.s32.totalorder %s36, 1
      %p138 = por %p136, %p137
      %p139 = scmp.ne.s32.totalorder %s130, %s131
      %p140 = scmp.eq.s32.totalorder %s36, 0
      %p141 = por %p139, %p140
      %p142 = scmp.ne.s32.totalorder %s130, %s131
      %p143 = scmp.eq.s32.totalorder %s37, 1
      %p144 = por %p142, %p143
      %p146 = scmp.ne.s32.totalorder %s131, %s145
      %p147 = scmp.eq.s32.totalorder %s37, 0
      %p148 = por %p146, %p147
      %s150 = sadd.s32 %s149, 1
      %p153 = scmp.eq.s32.totalorder %s31, 1
      %p154 = scmp.ne.s32.totalorder %s149, %s151
      %p155 = scmp.eq.s32.totalorder %s31, 0
      %p156 = por %p154, %p155
      %p157 = scmp.ne.s32.totalorder %s149, %s151
      %p158 = scmp.eq.s32.totalorder %s36, 1
      %p159 = por %p157, %p158
      %p160 = scmp.ne.s32.totalorder %s151, %s152
      %p161 = scmp.eq.s32.totalorder %s36, 0
      %p162 = por %p160, %p161
      %p163 = scmp.ne.s32.totalorder %s151, %s152
      %p164 = scmp.eq.s32.totalorder %s37, 1
      %p165 = por %p163, %p164
      %p167 = scmp.ne.s32.totalorder %s152, %s166
      %p168 = scmp.eq.s32.totalorder %s37, 0
      %p169 = por %p167, %p168
      %s171 = sadd.s32 %s170, 1
      %p174 = scmp.eq.s32.totalorder %s31, 1
      %p175 = scmp.ne.s32.totalorder %s170, %s172
      %p176 = scmp.eq.s32.totalorder %s31, 0
      %p177 = por %p175, %p176
      %p178 = scmp.ne.s32.totalorder %s170, %s172
      %p179 = scmp.eq.s32.totalorder %s36, 1
      %p180 = por %p178, %p179
      %p181 = scmp.ne.s32.totalorder %s172, %s173
      %p182 = scmp.eq.s32.totalorder %s36, 0
      %p183 = por %p181, %p182
      %p184 = scmp.ne.s32.totalorder %s172, %s173
      %p185 = scmp.eq.s32.totalorder %s37, 1
      %p186 = por %p184, %p185
      %p188 = scmp.ne.s32.totalorder %s173, %s187
      %p189 = scmp.eq.s32.totalorder %s37, 0
      %p190 = por %p188, %p189
      %s192 = sadd.s32 %s191, 1
      %p195 = scmp.eq.s32.totalorder %s31, 1
      %p196 = scmp.ne.s32.totalorder %s191, %s193
      %p197 = scmp.eq.s32.totalorder %s31, 0
      %p198 = por %p196, %p197
      %p199 = scmp.ne.s32.totalorder %s191, %s193
      %p200 = scmp.eq.s32.totalorder %s36, 1
      %p201 = por %p199, %p200
      %p202 = scmp.ne.s32.totalorder %s193, %s194
      %p203 = scmp.eq.s32.totalorder %s36, 0
      %p204 = por %p202, %p203
      %p205 = scmp.ne.s32.totalorder %s193, %s194
      %p206 = scmp.eq.s32.totalorder %s37, 1
      %p207 = por %p205, %p206
      %p209 = scmp.ne.s32.totalorder %s194, %s208
      %p210 = scmp.eq.s32.totalorder %s37, 0
      %p211 = por %p209, %p210
      %s213 = sadd.s32 %s212, 1
      %p216 = scmp.eq.s32.totalorder %s31, 1
      %p217 = scmp.ne.s32.totalorder %s212, %s214
      %p218 = scmp.eq.s32.totalorder %s31, 0
      %p219 = por %p217, %p218
      %p220 = scmp.ne.s32.totalorder %s212, %s214
      %p221 = scmp.eq.s32.totalorder %s36, 1
      %p222 = por %p220, %p221
      %p223 = scmp.ne.s32.totalorder %s214, %s215
      %p224 = scmp.eq.s32.totalorder %s36, 0
      %p225 = por %p223, %p224
      %p226 = scmp.ne.s32.totalorder %s214, %s215
      %p227 = scmp.eq.s32.totalorder %s37, 1
      %p228 = por %p226, %p227
      %p230 = scmp.ne.s32.totalorder %s215, %s229
      %p231 = scmp.eq.s32.totalorder %s37, 0
      %p232 = por %p230, %p231
      %s234 = sadd.s32 %s233, 1
      %p237 = scmp.eq.s32.totalorder %s31, 1
      %p238 = scmp.ne.s32.totalorder %s233, %s235
      %p239 = scmp.eq.s32.totalorder %s31, 0
      %p240 = por %p238, %p239
      %p241 = scmp.ne.s32.totalorder %s233, %s235
      %p242 = scmp.eq.s32.totalorder %s36, 1
      %p243 = por %p241, %p242
      %p244 = scmp.ne.s32.totalorder %s235, %s236
      %p245 = scmp.eq.s32.totalorder %s36, 0
      %p246 = por %p244, %p245
      %p247 = scmp.ne.s32.totalorder %s235, %s236
      %p248 = scmp.eq.s32.totalorder %s37, 1
      %p249 = por %p247, %p248
      %p251 = scmp.ne.s32.totalorder %s236, %s250
      %p252 = scmp.eq.s32.totalorder %s37, 0
      %p253 = por %p251, %p252
      %s255 = sadd.s32 %s254, 1
      %p258 = scmp.eq.s32.totalorder %s31, 1
      %p259 = scmp.ne.s32.totalorder %s254, %s256
      %p260 = scmp.eq.s32.totalorder %s31, 0
      %p261 = por %p259, %p260
      %p262 = scmp.ne.s32.totalorder %s254, %s256
      %p263 = scmp.eq.s32.totalorder %s36, 1
      %p264 = por %p262, %p263
      %p265 = scmp.ne.s32.totalorder %s256, %s257
      %p266 = scmp.eq.s32.totalorder %s36, 0
      %p267 = por %p265, %p266
      %p268 = scmp.ne.s32.totalorder %s256, %s257
      %p269 = scmp.eq.s32.totalorder %s37, 1
      %p270 = por %p268, %p269
      %p272 = scmp.ne.s32.totalorder %s257, %s271
      %p273 = scmp.eq.s32.totalorder %s37, 0
      %p274 = por %p272, %p273
      %s276 = sadd.s32 %s275, 1
      %p279 = scmp.eq.s32.totalorder %s31, 1
      %p280 = scmp.ne.s32.totalorder %s275, %s277
      %p281 = scmp.eq.s32.totalorder %s31, 0
      %p282 = por %p280, %p281
      %p283 = scmp.ne.s32.totalorder %s275, %s277
      %p284 = scmp.eq.s32.totalorder %s36, 1
      %p285 = por %p283, %p284
      %p286 = scmp.ne.s32.totalorder %s277, %s278
      %p287 = scmp.eq.s32.totalorder %s36, 0
      %p288 = por %p286, %p287
      %p289 = scmp.ne.s32.totalorder %s277, %s278
      %p290 = scmp.eq.s32.totalorder %s37, 1
      %p291 = por %p289, %p290
      %p293 = scmp.ne.s32.totalorder %s278, %s292
      %p294 = scmp.eq.s32.totalorder %s37, 0
      %p295 = por %p293, %p294
      %s297 = sadd.s32 %s296, 1
      %p300 = scmp.eq.s32.totalorder %s31, 1
      %p301 = scmp.ne.s32.totalorder %s296, %s298
      %p302 = scmp.eq.s32.totalorder %s31, 0
      %p303 = por %p301, %p302
      %p304 = scmp.ne.s32.totalorder %s296, %s298
      %p305 = scmp.eq.s32.totalorder %s36, 1
      %p306 = por %p304, %p305
      %p307 = scmp.ne.s32.totalorder %s298, %s299
      %p308 = scmp.eq.s32.totalorder %s36, 0
      %p309 = por %p307, %p308
      %p310 = scmp.ne.s32.totalorder %s298, %s299
      %p311 = scmp.eq.s32.totalorder %s37, 1
      %p312 = por %p310, %p311
      %p314 = scmp.ne.s32.totalorder %s299, %s313
      %p315 = scmp.eq.s32.totalorder %s37, 0
      %p316 = por %p314, %p315
      %s318 = sadd.s32 %s317, 1
      %p321 = scmp.eq.s32.totalorder %s31, 1
      %p322 = scmp.ne.s32.totalorder %s317, %s319
      %p323 = scmp.eq.s32.totalorder %s31, 0
      %p324 = por %p322, %p323
      %p325 = scmp.ne.s32.totalorder %s317, %s319
      %p326 = scmp.eq.s32.totalorder %s36, 1
      %p327 = por %p325, %p326
      %p328 = scmp.ne.s32.totalorder %s319, %s320
      %p329 = scmp.eq.s32.totalorder %s36, 0
      %p330 = por %p328, %p329
      %p331 = scmp.ne.s32.totalorder %s319, %s320
      %p332 = scmp.eq.s32.totalorder %s37, 1
      %p333 = por %p331, %p332
      %p335 = scmp.ne.s32.totalorder %s320, %s334
      %p336 = scmp.eq.s32.totalorder %s37, 0
      %p337 = por %p335, %p336
      %s339 = sadd.s32 %s338, 1
      %p342 = scmp.eq.s32.totalorder %s31, 1
      %p343 = scmp.ne.s32.totalorder %s338, %s340
      %p344 = scmp.eq.s32.totalorder %s31, 0
      %p345 = por %p343, %p344
      %p346 = scmp.ne.s32.totalorder %s338, %s340
      %p347 = scmp.eq.s32.totalorder %s36, 1
      %p348 = por %p346, %p347
      %p349 = scmp.ne.s32.totalorder %s340, %s341
      %p350 = scmp.eq.s32.totalorder %s36, 0
      %p351 = por %p349, %p350
      %p352 = scmp.ne.s32.totalorder %s340, %s341
      %p353 = scmp.eq.s32.totalorder %s37, 1
      %p354 = por %p352, %p353
      %p356 = scmp.ne.s32.totalorder %s341, %s355
      %p357 = scmp.eq.s32.totalorder %s37, 0
      %p358 = por %p356, %p357
      %s360 = sadd.s32 %s359, 1
      %p363 = scmp.eq.s32.totalorder %s31, 1
      %p364 = scmp.ne.s32.totalorder %s359, %s361
      %p365 = scmp.eq.s32.totalorder %s31, 0
      %p366 = por %p364, %p365
      %p367 = scmp.ne.s32.totalorder %s359, %s361
      %p368 = scmp.eq.s32.totalorder %s36, 1
      %p369 = por %p367, %p368
      %p370 = scmp.ne.s32.totalorder %s361, %s362
      %p371 = scmp.eq.s32.totalorder %s36, 0
      %p372 = por %p370, %p371
      %p373 = scmp.ne.s32.totalorder %s361, %s362
      %p374 = scmp.eq.s32.totalorder %s37, 1
      %p375 = por %p373, %p374
      %p377 = scmp.ne.s32.totalorder %s362, %s376
      %p378 = scmp.eq.s32.totalorder %s37, 0
      %p379 = por %p377, %p378
      %s381 = sadd.s32 %s380, 1
      %p384 = scmp.eq.s32.totalorder %s31, 1
      %p385 = scmp.ne.s32.totalorder %s380, %s382
      %p386 = scmp.eq.s32.totalorder %s31, 0
      %p387 = por %p385, %p386
      %p388 = scmp.ne.s32.totalorder %s380, %s382
      %p389 = scmp.eq.s32.totalorder %s36, 1
      %p390 = por %p388, %p389
      %p391 = scmp.ne.s32.totalorder %s382, %s383
      %p392 = scmp.eq.s32.totalorder %s36, 0
      %p393 = por %p391, %p392
      %p394 = scmp.ne.s32.totalorder %s382, %s383
      %p395 = scmp.eq.s32.totalorder %s37, 1
      %p396 = por %p394, %p395
      %p398 = scmp.ne.s32.totalorder %s383, %s397
      %p399 = scmp.eq.s32.totalorder %s37, 0
      %p400 = por %p398, %p399
      %s402 = sadd.s32 %s401, 1
      %p405 = scmp.eq.s32.totalorder %s31, 1
      %p406 = scmp.ne.s32.totalorder %s401, %s403
      %p407 = scmp.eq.s32.totalorder %s31, 0
      %p408 = por %p406, %p407
      %p409 = scmp.ne.s32.totalorder %s401, %s403
      %p410 = scmp.eq.s32.totalorder %s36, 1
      %p411 = por %p409, %p410
      %p412 = scmp.ne.s32.totalorder %s403, %s404
      %p413 = scmp.eq.s32.totalorder %s36, 0
      %p414 = por %p412, %p413
      %p415 = scmp.ne.s32.totalorder %s403, %s404
      %p416 = scmp.eq.s32.totalorder %s37, 1
      %p417 = por %p415, %p416
      %p419 = scmp.ne.s32.totalorder %s404, %s418
      %p420 = scmp.eq.s32.totalorder %s37, 0
      %p421 = por %p419, %p420
      %s423 = sadd.s32 %s422, 1
      %p426 = scmp.eq.s32.totalorder %s31, 1
      %p427 = scmp.ne.s32.totalorder %s422, %s424
      %p428 = scmp.eq.s32.totalorder %s31, 0
      %p429 = por %p427, %p428
      %p430 = scmp.ne.s32.totalorder %s422, %s424
      %p431 = scmp.eq.s32.totalorder %s36, 1
      %p432 = por %p430, %p431
      %p433 = scmp.ne.s32.totalorder %s424, %s425
      %p434 = scmp.eq.s32.totalorder %s36, 0
      %p435 = por %p433, %p434
      %p436 = scmp.ne.s32.totalorder %s424, %s425
      %p437 = scmp.eq.s32.totalorder %s37, 1
      %p438 = por %p436, %p437
      %p440 = scmp.ne.s32.totalorder %s425, %s439
      %p441 = scmp.eq.s32.totalorder %s37, 0
      %p442 = por %p440, %p441
      %s443 = ssub.s32 %s31, %s38
      %p444 = scmp.eq.s32.totalorder %s443, 0
      %s446 = sadd.s32 %s445, 1
      %s447 = scalar_select %p444, %s445, %s446
      %p450 = pneg %p444
      %p451 = scmp.eq.s32.totalorder %s31, 1
      %p452 = por %p450, %p451
      %p453 = scmp.ne.s32.totalorder %s445, %s448
      %p454 = scmp.eq.s32.totalorder %s31, 0
      %p455 = por %p453, %p454
      %p456 = scmp.ne.s32.totalorder %s445, %s448
      %p457 = scmp.eq.s32.totalorder %s36, 1
      %p458 = por %p456, %p457
      %p459 = scmp.ne.s32.totalorder %s448, %s449
      %p460 = scmp.eq.s32.totalorder %s36, 0
      %p461 = por %p459, %p460
      %p462 = scmp.ne.s32.totalorder %s448, %s449
      %p463 = scmp.eq.s32.totalorder %s37, 1
      %p464 = por %p462, %p463
      %p466 = scmp.ne.s32.totalorder %s449, %s465
      %p467 = scmp.eq.s32.totalorder %s37, 0
      %p468 = por %p466, %p467
      %p469 = scmp.le.s32.totalorder 1, %s31
      %p470 = scmp.lt.s32.totalorder %s31, 3
      %p471 = pnand %p469, %p470
      %p472 = pneg %p471
      // Predicated region
      $region9: #{block_forward.1} parent=5 // pred_check
        _
      $region10: #{block_forward.1} parent=5 // pred_check_branch
        %474 = sbr.rel (%p471) target = $region12
      $region11: #{block_forward.1} parent=5 // pred_region
        %s475 = ssub.s32 %s31, 1
        // Predicated region
        $region13: #{block_forward.1} parent=11 // pred_check
          %p476 = pneg %p78
        $region14: #{block_forward.1} parent=11 // pred_check_branch
          %478 = sbr.rel (%p476) target = $region16
        $region15: #{block_forward.1} parent=11 // pred_region
          %s480 = ssub.s32 16, 16
          %481 = vsyncadd [#allocation4], %s480
          %s483 = sshll.u32 [#allocation3], 4
          %s484 = int_to_ptr.vmem [resolvable:$true] %s483
          %486 = dma.hbm_to_vmem [thread:$0]  %s1, 16, %s484, [#allocation4]
        $region16: #{block_forward.1} parent=11 // pred_fallthru
          _
        // Predicated region
        $region17: #{block_forward.1} parent=11 // pred_check
          %p487 = pneg %p99
        $region18: #{block_forward.1} parent=11 // pred_check_branch
          %489 = sbr.rel (%p487) target = $region20
        $region19: #{block_forward.1} parent=11 // pred_region
          %s491 = ssub.s32 16, 16
          %492 = vsyncadd [#allocation7], %s491
          %s494 = sshll.u32 [#allocation6], 4
          %s495 = int_to_ptr.vmem [resolvable:$true] %s494
          %497 = dma.hbm_to_vmem [thread:$0]  %s2, 16, %s495, [#allocation7]
        $region20: #{block_forward.1} parent=11 // pred_fallthru
          _
        // Predicated region
        $region21: #{block_forward.1} parent=11 // pred_check
          %p498 = pneg %p120
        $region22: #{block_forward.1} parent=11 // pred_check_branch
          %500 = sbr.rel (%p498) target = $region24
        $region23: #{block_forward.1} parent=11 // pred_region
          _
        $region24: #{block_forward.1} parent=11 // pred_fallthru
          _
        // Predicated region
        $region25: #{block_forward.1} parent=11 // pred_check
          %p501 = pneg %p141
        $region26: #{block_forward.1} parent=11 // pred_check_branch
          %503 = sbr.rel (%p501) target = $region28
        $region27: #{block_forward.1} parent=11 // pred_region
          _
        $region28: #{block_forward.1} parent=11 // pred_fallthru
          _
        // Predicated region
        $region29: #{block_forward.1} parent=11 // pred_check
          %p504 = pneg %p162
        $region30: #{block_forward.1} parent=11 // pred_check_branch
          %506 = sbr.rel (%p504) target = $region32
        $region31: #{block_forward.1} parent=11 // pred_region
          _
        $region32: #{block_forward.1} parent=11 // pred_fallthru
          _
        // Predicated region
        $region33: #{block_forward.1} parent=11 // pred_check
          %p507 = pneg %p183
        $region34: #{block_forward.1} parent=11 // pred_check_branch
          %509 = sbr.rel (%p507) target = $region36
        $region35: #{block_forward.1} parent=11 // pred_region
          _
        $region36: #{block_forward.1} parent=11 // pred_fallthru
          _
        // Predicated region
        $region37: #{block_forward.1} parent=11 // pred_check
          %p510 = pneg %p204
        $region38: #{block_forward.1} parent=11 // pred_check_branch
          %512 = sbr.rel (%p510) target = $region40
        $region39: #{block_forward.1} parent=11 // pred_region
          _
        $region40: #{block_forward.1} parent=11 // pred_fallthru
          _
        // Predicated region
        $region41: #{block_forward.1} parent=11 // pred_check
          %p513 = pneg %p225
        $region42: #{block_forward.1} parent=11 // pred_check_branch
          %515 = sbr.rel (%p513) target = $region44
        $region43: #{block_forward.1} parent=11 // pred_region
          _
        $region44: #{block_forward.1} parent=11 // pred_fallthru
          _
        // Predicated region
        $region45: #{block_forward.1} parent=11 // pred_check
          %p516 = pneg %p246
        $region46: #{block_forward.1} parent=11 // pred_check_branch
          %518 = sbr.rel (%p516) target = $region48
        $region47: #{block_forward.1} parent=11 // pred_region
          _
        $region48: #{block_forward.1} parent=11 // pred_fallthru
          _
        // Predicated region
        $region49: #{block_forward.1} parent=11 // pred_check
          %p519 = pneg %p267
        $region50: #{block_forward.1} parent=11 // pred_check_branch
          %521 = sbr.rel (%p519) target = $region52
        $region51: #{block_forward.1} parent=11 // pred_region
          _
        $region52: #{block_forward.1} parent=11 // pred_fallthru
          _
        // Predicated region
        $region53: #{block_forward.1} parent=11 // pred_check
          %p522 = pneg %p288
        $region54: #{block_forward.1} parent=11 // pred_check_branch
          %524 = sbr.rel (%p522) target = $region56
        $region55: #{block_forward.1} parent=11 // pred_region
          _
        $region56: #{block_forward.1} parent=11 // pred_fallthru
          _
        // Predicated region
        $region57: #{block_forward.1} parent=11 // pred_check
          %p525 = pneg %p309
        $region58: #{block_forward.1} parent=11 // pred_check_branch
          %527 = sbr.rel (%p525) target = $region60
        $region59: #{block_forward.1} parent=11 // pred_region
          _
        $region60: #{block_forward.1} parent=11 // pred_fallthru
          _
        // Predicated region
        $region61: #{block_forward.1} parent=11 // pred_check
          %p528 = pneg %p330
        $region62: #{block_forward.1} parent=11 // pred_check_branch
          %530 = sbr.rel (%p528) target = $region64
        $region63: #{block_forward.1} parent=11 // pred_region
          %s532 = ssub.s32 16, 16
          %533 = vsyncadd [#allocation7], %s532
          %s535 = sshll.u32 [#allocation8], 4
          %s536 = int_to_ptr.vmem [resolvable:$true] %s535
          %538 = dma.hbm_to_vmem [thread:$0]  %s13, 16, %s536, [#allocation7]
        $region64: #{block_forward.1} parent=11 // pred_fallthru
          _
        // Predicated region
        $region65: #{block_forward.1} parent=11 // pred_check
          %p539 = pneg %p351
        $region66: #{block_forward.1} parent=11 // pred_check_branch
          %541 = sbr.rel (%p539) target = $region68
        $region67: #{block_forward.1} parent=11 // pred_region
          %s543 = ssub.s32 16, 16
          %544 = vsyncadd [#allocation10], %s543
          %s546 = sshll.u32 [#allocation9], 4
          %s547 = int_to_ptr.vmem [resolvable:$true] %s546
          %549 = dma.hbm_to_vmem [thread:$0]  %s14, 16, %s547, [#allocation10]
        $region68: #{block_forward.1} parent=11 // pred_fallthru
          _
        // Predicated region
        $region69: #{block_forward.1} parent=11 // pred_check
          %p550 = pneg %p372
        $region70: #{block_forward.1} parent=11 // pred_check_branch
          %552 = sbr.rel (%p550) target = $region72
        $region71: #{block_forward.1} parent=11 // pred_region
          _
        $region72: #{block_forward.1} parent=11 // pred_fallthru
          _
        // Predicated region
        $region73: #{block_forward.1} parent=11 // pred_check
          %p553 = pneg %p393
        $region74: #{block_forward.1} parent=11 // pred_check_branch
          %555 = sbr.rel (%p553) target = $region76
        $region75: #{block_forward.1} parent=11 // pred_region
          _
        $region76: #{block_forward.1} parent=11 // pred_fallthru
          _
        // Predicated region
        $region77: #{block_forward.1} parent=11 // pred_check
          %p556 = pneg %p414
        $region78: #{block_forward.1} parent=11 // pred_check_branch
          %558 = sbr.rel (%p556) target = $region80
        $region79: #{block_forward.1} parent=11 // pred_region
          _
        $region80: #{block_forward.1} parent=11 // pred_fallthru
          _
        // Predicated region
        $region81: #{block_forward.1} parent=11 // pred_check
          %p559 = pneg %p435
        $region82: #{block_forward.1} parent=11 // pred_check_branch
          %561 = sbr.rel (%p559) target = $region84
        $region83: #{block_forward.1} parent=11 // pred_region
          %s563 = ssub.s32 16, 16
          %564 = vsyncadd [#allocation10], %s563
          %s566 = sshll.u32 [#allocation11], 4
          %s567 = int_to_ptr.vmem [resolvable:$true] %s566
          %569 = dma.hbm_to_vmem [thread:$0]  %s18, 16, %s567, [#allocation10]
        $region84: #{block_forward.1} parent=11 // pred_fallthru
          _
      $region12: #{block_forward.1} parent=5 // pred_fallthru
        _
      %p570 = scmp.lt.s32.totalorder %s31, 2
      // Predicated region
      $region85: #{block_forward.1} parent=5 // pred_check
        %p571 = pneg %p570
      $region86: #{block_forward.1} parent=5 // pred_check_branch
        %573 = sbr.rel (%p571) target = $region88
      $region87: #{block_forward.1} parent=5 // pred_region
        // Predicated region
        $region89: #{block_forward.1} parent=87 // pred_check
          %p574 = pneg %p51
        $region90: #{block_forward.1} parent=87 // pred_check_branch
          %576 = sbr.rel (%p574) target = $region92
        $region91: #{block_forward.1} parent=87 // pred_region
          %p577 = scmp.lt.s32.totalorder %s31, 1
          %s578 = scalar_select %p577, %s31, 1
          %s579 = smul.addr %s578, 8
          %s580 = scalar_lea.vmem %s0, %s579
        $region92: #{block_forward.1} parent=87 // pred_fallthru
          _
      $region88: #{block_forward.1} parent=5 // pred_fallthru
        _
      %p581 = scmp.le.s32.totalorder 1, %s31
      %p582 = scmp.lt.s32.totalorder %s31, 3
      %p583 = pnand %p581, %p582
      %p584 = pneg %p583
      // Predicated region
      $region93: #{block_forward.1} parent=5 // pred_check
        _
      $region94: #{block_forward.1} parent=5 // pred_check_branch
        %586 = sbr.rel (%p583) target = $region96
      $region95: #{block_forward.1} parent=5 // pred_region
        %s587 = ssub.s32 %s31, 1
        // Predicated region
        $region97: #{block_forward.1} parent=95 // pred_check
          %p588 = pneg %p78
        $region98: #{block_forward.1} parent=95 // pred_check_branch
          %590 = sbr.rel (%p588) target = $region100
        $region99: #{block_forward.1} parent=95 // pred_region
          %591 = dma.done [#allocation4], 16
        $region100: #{block_forward.1} parent=95 // pred_fallthru
          _
        // Predicated region
        $region101: #{block_forward.1} parent=95 // pred_check
          %p592 = pneg %p99
        $region102: #{block_forward.1} parent=95 // pred_check_branch
          %594 = sbr.rel (%p592) target = $region104
        $region103: #{block_forward.1} parent=95 // pred_region
          %595 = dma.done [#allocation7], 16
        $region104: #{block_forward.1} parent=95 // pred_fallthru
          _
        // Predicated region
        $region105: #{block_forward.1} parent=95 // pred_check
          %p596 = pneg %p330
        $region106: #{block_forward.1} parent=95 // pred_check_branch
          %598 = sbr.rel (%p596) target = $region108
        $region107: #{block_forward.1} parent=95 // pred_region
          %599 = dma.done [#allocation7], 16
        $region108: #{block_forward.1} parent=95 // pred_fallthru
          _
        // Predicated region
        $region109: #{block_forward.1} parent=95 // pred_check
          %p600 = pneg %p351
        $region110: #{block_forward.1} parent=95 // pred_check_branch
          %602 = sbr.rel (%p600) target = $region112
        $region111: #{block_forward.1} parent=95 // pred_region
          %603 = dma.done [#allocation10], 16
        $region112: #{block_forward.1} parent=95 // pred_fallthru
          _
        // Predicated region
        $region113: #{block_forward.1} parent=95 // pred_check
          %p604 = pneg %p435
        $region114: #{block_forward.1} parent=95 // pred_check_branch
          %606 = sbr.rel (%p604) target = $region116
        $region115: #{block_forward.1} parent=95 // pred_region
          %607 = dma.done [#allocation10], 16
        $region116: #{block_forward.1} parent=95 // pred_fallthru
          _
        %p608 = scmp.lt.s32.totalorder %s36, 1
        %s609 = scalar_select %p608, %s36, 1
        %s610 = smul.addr %s609, 8
        %s611 = scalar_lea.vmem %s0, %s610
        %p612 = pneg %p57
        %p613 = pneg %p54
        %p614 = pneg %p78
        %p615 = pneg %p75
        %p616 = pneg %p99
        %p617 = pneg %p96
        %p618 = pneg %p120
        %p619 = pneg %p117
        %p620 = pneg %p141
        %p621 = pneg %p138
        %p622 = pneg %p162
        %p623 = pneg %p159
        %p624 = pneg %p183
        %p625 = pneg %p180
        %p626 = pneg %p204
        %p627 = pneg %p201
        %p628 = pneg %p225
        %p629 = pneg %p222
        %p630 = pneg %p246
        %p631 = pneg %p243
        %p632 = pneg %p267
        %p633 = pneg %p264
        %p634 = pneg %p288
        %p635 = pneg %p285
        %p636 = pneg %p309
        %p637 = pneg %p306
        %p638 = pneg %p330
        %p639 = pneg %p327
        %p640 = pneg %p351
        %p641 = pneg %p348
        %p642 = pneg %p372
        %p643 = pneg %p369
        %p644 = pneg %p393
        %p645 = pneg %p390
        %p646 = pneg %p414
        %p647 = pneg %p411
        %p648 = pneg %p435
        %p649 = pneg %p432
        %p650 = pneg %p461
        %p651 = pneg %p458
        %s652 = sand.u32 %s448, 1
        %s653 = scalar_lea.sflag [#allocation5], %s652
        %s654 = sand.u32 %s448, 1
        %s655 = smul.addr %s654, 8
        %s656 = scalar_lea.vmem [#allocation12], %s655
        %p657 = scmp.lt.s32.totalorder %s36, 1
        %s658 = scalar_select %p657, %s36, 1
        %s659 = smul.addr %s658, 8
        %s660 = scalar_lea.vmem %s0, %s659
        %v662 = vld [vmem:[%s660] sm:$0xff]
        %vm663 = vcmask 523264
        %v664 = vsel %vm663, %v662, 0.0
        %665 = vadd.xlane.f32.xlu0 %v664
        %v666 = vpop.xlane.xlu0 %665
        %v667 = vrcp.pop 64.0
        %v668 = vmul.f32 %v666, %v667
        %v669 = vsub.f32 %v662, %v668
        %v670 = vmul.f32 %v669, %v669
        %v671 = vsel %vm663, %v670, 0.0
        %672 = vadd.xlane.f32.xlu0 %v671
        %v673 = vpop.xlane.xlu0 %672
        %v674 = vmul.f32 %v673, %v667
        %v675 = vadd.f32 %v674, 1e-05
        %v676 = vrsqrt.pop %v675
        %v677 = vmul.f32 %v669, %v676
        %v678 = vld [vmem:[#allocation3] sm:$0x1]
        %v680 = vlaneseq
        %v681 = vshrl.u32 %v680, 7
        %v682 = vsub.s32 0, %v681
        %v683 = vrot.slane %v678, %v682
        %v685 = vmul.f32 %v677, %v683
        %v686 = vld [vmem:[#allocation6] sm:$0x1]
        %v688 = vlaneseq
        %v689 = vshrl.u32 %v688, 7
        %v690 = vsub.s32 0, %v689
        %v691 = vrot.slane %v686, %v690
        %v693 = vadd.f32 %v685, %v691
        %v694 = vld [vmem:[%s3] sm:$0xf]
        %v695 = vld [vmem:[%s3 + $0x4] sm:$0xf]
        %v696 = vld [vmem:[%s3 + $0x8] sm:$0xf]
        %v697 = vld [vmem:[%s3 + $0xc] sm:$0xf]
        %v698 = vld [vmem:[%s3 + $0x10] sm:$0xf]
        %v699 = vld [vmem:[%s3 + $0x14] sm:$0xf]
        %v700 = vld [vmem:[%s3 + $0x18] sm:$0xf]
        %v701 = vld [vmem:[%s3 + $0x1c] sm:$0xf]
        %v702 = vld [vmem:[%s4] sm:$0x1]
        %v703 = vpack.c.bf16 %v693, %v693
        %v705 = vlaneseq
        %v706 = vshrl.u32 %v705, 7
        %v707 = vsub.s32 0, %v706
        %v708 = vrot.slane %v702, %v707
        %v718 = vunpack.c.l.b16 %v694
        %v719 = vunpack.c.l.b16 %v695
        %v720 = vunpack.c.l.b16 %v696
        %v721 = vunpack.c.l.b16 %v697
        %v722 = vunpack.c.l.b16 %v698
        %v723 = vunpack.c.l.b16 %v699
        %v724 = vunpack.c.l.b16 %v700
        %v725 = vunpack.c.l.b16 %v701
        %v726 = vpack.c.b16 %v719, %v718
        %v727 = vpack.c.b16 %v721, %v720
        %v728 = vpack.c.b16 %v723, %v722
        %v729 = vpack.c.b16 %v725, %v724
        %v735 = vsel %vm663, %v703, 0
        %737 = vmatprep.subr.bf16.mxu0 0
        %738 = vmatpush1.bf16.msra.mxu0 %v726
        %739 = vmatprep.subr.bf16.mxu0 0
        %740 = vmatpush1.bf16.msra.mxu0 %v727
        %741 = vmatprep.subr.bf16.mxu0 0
        %742 = vmatpush1.bf16.msra.mxu0 %v728
        %743 = vmatprep.subr.bf16.mxu0 0
        %744 = vmatpush1.bf16.msra.mxu0 %v729
        %745 = vmatprep.subr.bf16.mxu0 0
        %746 = vmatpush1.bf16.msra.mxu0 0
        %747 = vmatprep.subr.bf16.mxu0 0
        %748 = vmatpush1.bf16.msra.mxu0 0
        %749 = vmatprep.subr.bf16.mxu0 0
        %750 = vmatpush1.bf16.msra.mxu0 0
        %751 = vmatprep.subr.bf16.mxu0 0
        %752 = vmatpush1.bf16.msra.mxu0 0
        %753 = vmatprep.subr.bf16.mxu0 0
        %754 = vmatpush1.bf16.msra.mxu0 0
        %755 = vmatprep.subr.bf16.mxu0 0
        %756 = vmatpush1.bf16.msra.mxu0 0
        %757 = vmatprep.subr.bf16.mxu0 0
        %758 = vmatpush1.bf16.msra.mxu0 0
        %759 = vmatprep.subr.bf16.mxu0 0
        %760 = vmatpush1.bf16.msra.mxu0 0
        %761 = vmatprep.subr.bf16.mxu0 0
        %762 = vmatpush1.bf16.msra.mxu0 0
        %763 = vmatprep.subr.bf16.mxu0 0
        %764 = vmatpush1.bf16.msra.mxu0 0
        %765 = vmatprep.subr.bf16.mxu0 0
        %766 = vmatpush1.bf16.msra.mxu0 0
        %767 = vmatprep.subr.bf16.mxu0 0
        %768 = vmatpush1.bf16.msra.mxu0 0
        %769 = vmatprep.mubr.bf16.mxu0 0
        %770 = vmatmul.mubr.bf16.gmra.mrb[0].mxu0 %v735
        %v771 = vpop.f32.mrb[0].mxu0
        %v772 = vadd.f32 %v708, %v771
        %v773 = vpop.f32.mrb[0].mxu0
        %v774 = vpop.f32.mrb[0].mxu0
        %v775 = vpop.f32.mrb[0].mxu0
        %776 = vdwg.mxu0
        %v777 = vld [vmem:[%s7] sm:$0xff]
        %v778 = vmul.f32 %v772, %v777
        %v779 = vld [vmem:[%s5] sm:$0xf]
        %v780 = vld [vmem:[%s5 + $0x4] sm:$0xf]
        %v781 = vld [vmem:[%s5 + $0x8] sm:$0xf]
        %v782 = vld [vmem:[%s5 + $0xc] sm:$0xf]
        %v783 = vld [vmem:[%s5 + $0x10] sm:$0xf]
        %v784 = vld [vmem:[%s5 + $0x14] sm:$0xf]
        %v785 = vld [vmem:[%s5 + $0x18] sm:$0xf]
        %v786 = vld [vmem:[%s5 + $0x1c] sm:$0xf]
        %v787 = vpack.c.bf16 %v772, %v772
        %v796 = vunpack.c.l.b16 %v779
        %v797 = vunpack.c.l.b16 %v780
        %v798 = vunpack.c.l.b16 %v781
        %v799 = vunpack.c.l.b16 %v782
        %v800 = vunpack.c.l.b16 %v783
        %v801 = vunpack.c.l.b16 %v784
        %v802 = vunpack.c.l.b16 %v785
        %v803 = vunpack.c.l.b16 %v786
        %v804 = vpack.c.b16 %v797, %v796
        %v805 = vpack.c.b16 %v799, %v798
        %v806 = vpack.c.b16 %v801, %v800
        %v807 = vpack.c.b16 %v803, %v802
        %v813 = vsel %vm663, %v787, 0
        %815 = vmatprep.subr.bf16.mxu0 0
        %816 = vmatpush1.bf16.msra.mxu0 %v804
        %817 = vmatprep.subr.bf16.mxu0 0
        %818 = vmatpush1.bf16.msra.mxu0 %v805
        %819 = vmatprep.subr.bf16.mxu0 0
        %820 = vmatpush1.bf16.msra.mxu0 %v806
        %821 = vmatprep.subr.bf16.mxu0 0
        %822 = vmatpush1.bf16.msra.mxu0 %v807
        %823 = vmatprep.subr.bf16.mxu0 0
        %824 = vmatpush1.bf16.msra.mxu0 0
        %825 = vmatprep.subr.bf16.mxu0 0
        %826 = vmatpush1.bf16.msra.mxu0 0
        %827 = vmatprep.subr.bf16.mxu0 0
        %828 = vmatpush1.bf16.msra.mxu0 0
        %829 = vmatprep.subr.bf16.mxu0 0
        %830 = vmatpush1.bf16.msra.mxu0 0
        %831 = vmatprep.subr.bf16.mxu0 0
        %832 = vmatpush1.bf16.msra.mxu0 0
        %833 = vmatprep.subr.bf16.mxu0 0
        %834 = vmatpush1.bf16.msra.mxu0 0
        %835 = vmatprep.subr.bf16.mxu0 0
        %836 = vmatpush1.bf16.msra.mxu0 0
        %837 = vmatprep.subr.bf16.mxu0 0
        %838 = vmatpush1.bf16.msra.mxu0 0
        %839 = vmatprep.subr.bf16.mxu0 0
        %840 = vmatpush1.bf16.msra.mxu0 0
        %841 = vmatprep.subr.bf16.mxu0 0
        %842 = vmatpush1.bf16.msra.mxu0 0
        %843 = vmatprep.subr.bf16.mxu0 0
        %844 = vmatpush1.bf16.msra.mxu0 0
        %845 = vmatprep.subr.bf16.mxu0 0
        %846 = vmatpush1.bf16.msra.mxu0 0
        %847 = vmatprep.mubr.bf16.mxu0 0
        %848 = vmatmul.mubr.bf16.gmra.mrb[0].mxu0 %v813
        %v849 = vpop.f32.mrb[0].mxu0
        %v850 = vadd.f32 0.0, %v849
        %v851 = vpop.f32.mrb[0].mxu0
        %v852 = vpop.f32.mrb[0].mxu0
        %v853 = vpop.f32.mrb[0].mxu0
        %854 = vdwg.mxu0
        %v855 = vld [vmem:[%s8] sm:$0xff]
        %v856 = vmul.f32 %v850, %v855
        %v857 = vadd.f32 %v778, %v856
        %v858 = vld [vmem:[%s9] sm:$0xff]
        %860 = vrot.lane.b32.xlu0 %v858, 64
        %v861 = vpop.permute.xlu0 %860
        %v863 = vmul.f32 %v772, %v861
        %v864 = vld [vmem:[%s6] sm:$0xf]
        %v865 = vld [vmem:[%s6 + $0x4] sm:$0xf]
        %v866 = vld [vmem:[%s6 + $0x8] sm:$0xf]
        %v867 = vld [vmem:[%s6 + $0xc] sm:$0xf]
        %869 = vrot.lane.b32.xlu0 %v787, 64
        %v870 = vpop.permute.xlu0 %869
        %v875 = vunpack.c.l.b16 %v864
        %v876 = vunpack.c.l.b16 %v865
        %v877 = vunpack.c.l.b16 %v866
        %v878 = vunpack.c.l.b16 %v867
        %v879 = vpack.c.b16 %v876, %v875
        %v880 = vpack.c.b16 %v878, %v877
        %vm883 = vcmask 261120
        %v885 = vsel %vm883, %v870, 0
        %887 = vmatprep.subr.bf16.mxu0 0
        %888 = vmatpush1.bf16.msra.mxu0 %v879
        %889 = vmatprep.subr.bf16.mxu0 0
        %890 = vmatpush1.bf16.msra.mxu0 %v880
        %891 = vmatprep.subr.bf16.mxu0 0
        %892 = vmatpush1.bf16.msra.mxu0 0
        %893 = vmatprep.subr.bf16.mxu0 0
        %894 = vmatpush1.bf16.msra.mxu0 0
        %895 = vmatprep.subr.bf16.mxu0 0
        %896 = vmatpush1.bf16.msra.mxu0 0
        %897 = vmatprep.subr.bf16.mxu0 0
        %898 = vmatpush1.bf16.msra.mxu0 0
        %899 = vmatprep.subr.bf16.mxu0 0
        %900 = vmatpush1.bf16.msra.mxu0 0
        %901 = vmatprep.subr.bf16.mxu0 0
        %902 = vmatpush1.bf16.msra.mxu0 0
        %903 = vmatprep.subr.bf16.mxu0 0
        %904 = vmatpush1.bf16.msra.mxu0 0
        %905 = vmatprep.subr.bf16.mxu0 0
        %906 = vmatpush1.bf16.msra.mxu0 0
        %907 = vmatprep.subr.bf16.mxu0 0
        %908 = vmatpush1.bf16.msra.mxu0 0
        %909 = vmatprep.subr.bf16.mxu0 0
        %910 = vmatpush1.bf16.msra.mxu0 0
        %911 = vmatprep.subr.bf16.mxu0 0
        %912 = vmatpush1.bf16.msra.mxu0 0
        %913 = vmatprep.subr.bf16.mxu0 0
        %914 = vmatpush1.bf16.msra.mxu0 0
        %915 = vmatprep.subr.bf16.mxu0 0
        %916 = vmatpush1.bf16.msra.mxu0 0
        %917 = vmatprep.subr.bf16.mxu0 0
        %918 = vmatpush1.bf16.msra.mxu0 0
        %919 = vmatprep.mubr.bf16.mxu0 0
        %920 = vmatmul.mubr.bf16.gmra.mrb[0].mxu0 %v885
        %v921 = vpop.f32.mrb[0].mxu0
        %v922 = vadd.f32 0.0, %v921
        %v923 = vpop.f32.mrb[0].mxu0
        %v924 = vpop.f32.mrb[0].mxu0
        %v925 = vpop.f32.mrb[0].mxu0
        %926 = vdwg.mxu0
        %v927 = vld [vmem:[%s10] sm:$0xff]
        %v928 = vmul.f32 %v922, %v927
        %930 = vrot.lane.b32.xlu0 %v928, 64
        %v931 = vpop.permute.xlu0 %930
        %v933 = vadd.f32 %v863, %v931
        %v934 = vpack.c.bf16 %v933, %v933
        %936 = vrot.lane.b32.xlu0 %v857, 112
        %v937 = vpop.permute.xlu0 %936
        %v939 = vpack.c.bf16 %v937, %v857
        %941 = vrot.lane.b32.xlu0 %v934, 64
        %v942 = vpop.permute.xlu0 %941
        %vm943 = vcmask 130048
        %v945 = vsel %vm943, %v939, 0
        %v948 = vsel %vm943, %v942, 0
        %950 = vmatprep.subr.bf16.mxu0 0
        %951 = vmatpush1.bf16.xpose.msra.mxu0 %v948
        %952 = vmatprep.subr.bf16.mxu0 0
        %953 = vmatpush1.bf16.xpose.msra.mxu0 0
        %954 = vmatprep.subr.bf16.mxu0 0
        %955 = vmatpush1.bf16.xpose.msra.mxu0 0
        %956 = vmatprep.subr.bf16.mxu0 0
        %957 = vmatpush1.bf16.xpose.msra.mxu0 0
        %958 = vmatprep.subr.bf16.mxu0 0
        %959 = vmatpush1.bf16.xpose.msra.mxu0 0
        %960 = vmatprep.subr.bf16.mxu0 0
        %961 = vmatpush1.bf16.xpose.msra.mxu0 0
        %962 = vmatprep.subr.bf16.mxu0 0
        %963 = vmatpush1.bf16.xpose.msra.mxu0 0
        %964 = vmatprep.subr.bf16.mxu0 0
        %965 = vmatpush1.bf16.xpose.msra.mxu0 0
        %966 = vmatprep.subr.bf16.mxu0 0
        %967 = vmatpush1.bf16.xpose.msra.mxu0 0
        %968 = vmatprep.subr.bf16.mxu0 0
        %969 = vmatpush1.bf16.xpose.msra.mxu0 0
        %970 = vmatprep.subr.bf16.mxu0 0
        %971 = vmatpush1.bf16.xpose.msra.mxu0 0
        %972 = vmatprep.subr.bf16.mxu0 0
        %973 = vmatpush1.bf16.xpose.msra.mxu0 0
        %974 = vmatprep.subr.bf16.mxu0 0
        %975 = vmatpush1.bf16.xpose.msra.mxu0 0
        %976 = vmatprep.subr.bf16.mxu0 0
        %977 = vmatpush1.bf16.xpose.msra.mxu0 0
        %978 = vmatprep.subr.bf16.mxu0 0
        %979 = vmatpush1.bf16.xpose.msra.mxu0 0
        %980 = vmatprep.subr.bf16.mxu0 0
        %981 = vmatpush1.bf16.xpose.msra.mxu0 0
        %982 = vmatprep.mubr.bf16.mxu0 0
        %983 = vmatmul.mubr.bf16.gmra.mrb[0].mxu0 %v945
        %v984 = vpop.f32.mrb[0].mxu0
        %v985 = vadd.f32 0.0, %v984
        %v986 = vpop.f32.mrb[0].mxu0
        %v987 = vpop.f32.mrb[0].mxu0
        %v988 = vadd.f32 0.0, %v987
        %v989 = vpop.f32.mrb[0].mxu0
        %990 = vdwg.mxu0
        %vm991 = vcmask 64512
        %v992 = vsel %vm991, %v985, -inf
        %993 = vmax.xlane.f32.xlu0 %v992
        %v994 = vpop.xlane.xlu0 %993
        %v995 = vsel %vm991, %v988, -inf
        %996 = vmax.xlane.f32.xlu0 %v995
        %v997 = vpop.xlane.xlu0 %996
        %v998 = vsub.f32 %v985, %v994
        %v999 = vsub.f32 %v988, %v997
        %v1000 = vmul.f32 %v998, 1.442695
        %v1001 = vpow.pop %v1000
        %v1002 = vmul.f32 %v999, 1.442695
        %v1003 = vpow.pop %v1002
        %v1004 = vsel %vm991, %v1001, 0.0
        %1005 = vadd.xlane.f32.xlu0 %v1004
        %v1006 = vpop.xlane.xlu0 %1005
        %v1007 = vsel %vm991, %v1003, 0.0
        %1008 = vadd.xlane.f32.xlu0 %v1007
        %v1009 = vpop.xlane.xlu0 %1008
        %v1010 = vrcp.pop %v1006
        %v1011 = vrcp.pop %v1009
        %v1012 = vmul.f32 %v1001, %v1010
        %v1013 = vmul.f32 %v1003, %v1011
        %v1014 = vpack.c.bf16 %v1013, %v1012
        %1015 = vrot.lane.b32.xlu0 %v787, 32
        %v1016 = vpop.permute.xlu0 %1015
        %v1018 = vsel %vm991, %v1014, 0
        %vm1020 = vcmask 1043456
        %v1022 = vsel %vm1020, %v1016, 0
        %1024 = vmatprep.subr.bf16.mxu0 0
        %1025 = vmatpush1.bf16.msra.mxu0 %v1022
        %1026 = vmatprep.subr.bf16.mxu0 0
        %1027 = vmatpush1.bf16.msra.mxu0 0
        %1028 = vmatprep.subr.bf16.mxu0 0
        %1029 = vmatpush1.bf16.msra.mxu0 0
        %1030 = vmatprep.subr.bf16.mxu0 0
        %1031 = vmatpush1.bf16.msra.mxu0 0
        %1032 = vmatprep.subr.bf16.mxu0 0
        %1033 = vmatpush1.bf16.msra.mxu0 0
        %1034 = vmatprep.subr.bf16.mxu0 0
        %1035 = vmatpush1.bf16.msra.mxu0 0
        %1036 = vmatprep.subr.bf16.mxu0 0
        %1037 = vmatpush1.bf16.msra.mxu0 0
        %1038 = vmatprep.subr.bf16.mxu0 0
        %1039 = vmatpush1.bf16.msra.mxu0 0
        %1040 = vmatprep.subr.bf16.mxu0 0
        %1041 = vmatpush1.bf16.msra.mxu0 0
        %1042 = vmatprep.subr.bf16.mxu0 0
        %1043 = vmatpush1.bf16.msra.mxu0 0
        %1044 = vmatprep.subr.bf16.mxu0 0
        %1045 = vmatpush1.bf16.msra.mxu0 0
        %1046 = vmatprep.subr.bf16.mxu0 0
        %1047 = vmatpush1.bf16.msra.mxu0 0
        %1048 = vmatprep.subr.bf16.mxu0 0
        %1049 = vmatpush1.bf16.msra.mxu0 0
        %1050 = vmatprep.subr.bf16.mxu0 0
        %1051 = vmatpush1.bf16.msra.mxu0 0
        %1052 = vmatprep.subr.bf16.mxu0 0
        %1053 = vmatpush1.bf16.msra.mxu0 0
        %1054 = vmatprep.subr.bf16.mxu0 0
        %1055 = vmatpush1.bf16.msra.mxu0 0
        %1056 = vmatprep.mubr.bf16.mxu0 0
        %1057 = vmatmul.mubr.bf16.gmra.mrb[0].mxu0 %v1018
        %v1058 = vpop.f32.mrb[0].mxu0
        %v1059 = vadd.f32 0.0, %v1058
        %v1060 = vpop.f32.mrb[0].mxu0
        %v1061 = vpop.f32.mrb[0].mxu0
        %v1062 = vadd.f32 0.0, %v1061
        %v1063 = vpop.f32.mrb[0].mxu0
        %1064 = vdwg.mxu0
        %1065 = vst.msk [vmem:[#allocation2] sm:$0xff] %vm943, %v1059
        %1067 = vrot.lane.b32.xlu0 %v1062, 16
        %v1068 = vpop.permute.xlu0 %1067
        %vm1070 = vcmask 261248
        %1071 = vst.msk [vmem:[#allocation2] sm:$0xff] %vm1070, %v1068
        %1073 = vrot.lane.b32.xlu0 %v939, 96
        %v1074 = vpop.permute.xlu0 %1073
        %1075 = vrot.lane.b32.xlu0 %v934, 48
        %v1076 = vpop.permute.xlu0 %1075
        %v1078 = vsel %vm943, %v1074, 0
        %v1081 = vsel %vm943, %v1076, 0
        %1083 = vmatprep.subr.bf16.mxu0 0
        %1084 = vmatpush1.bf16.xpose.msra.mxu0 %v1081
        %1085 = vmatprep.subr.bf16.mxu0 0
        %1086 = vmatpush1.bf16.xpose.msra.mxu0 0
        %1087 = vmatprep.subr.bf16.mxu0 0
        %1088 = vmatpush1.bf16.xpose.msra.mxu0 0
        %1089 = vmatprep.subr.bf16.mxu0 0
        %1090 = vmatpush1.bf16.xpose.msra.mxu0 0
        %1091 = vmatprep.subr.bf16.mxu0 0
        %1092 = vmatpush1.bf16.xpose.msra.mxu0 0
        %1093 = vmatprep.subr.bf16.mxu0 0
        %1094 = vmatpush1.bf16.xpose.msra.mxu0 0
        %1095 = vmatprep.subr.bf16.mxu0 0
        %1096 = vmatpush1.bf16.xpose.msra.mxu0 0
        %1097 = vmatprep.subr.bf16.mxu0 0
        %1098 = vmatpush1.bf16.xpose.msra.mxu0 0
        %1099 = vmatprep.subr.bf16.mxu0 0
        %1100 = vmatpush1.bf16.xpose.msra.mxu0 0
        %1101 = vmatprep.subr.bf16.mxu0 0
        %1102 = vmatpush1.bf16.xpose.msra.mxu0 0
        %1103 = vmatprep.subr.bf16.mxu0 0
        %1104 = vmatpush1.bf16.xpose.msra.mxu0 0
        %1105 = vmatprep.subr.bf16.mxu0 0
        %1106 = vmatpush1.bf16.xpose.msra.mxu0 0
        %1107 = vmatprep.subr.bf16.mxu0 0
        %1108 = vmatpush1.bf16.xpose.msra.mxu0 0
        %1109 = vmatprep.subr.bf16.mxu0 0
        %1110 = vmatpush1.bf16.xpose.msra.mxu0 0
        %1111 = vmatprep.subr.bf16.mxu0 0
        %1112 = vmatpush1.bf16.xpose.msra.mxu0 0
        %1113 = vmatprep.subr.bf16.mxu0 0
        %1114 = vmatpush1.bf16.xpose.msra.mxu0 0
        %1115 = vmatprep.mubr.bf16.mxu0 0
        %1116 = vmatmul.mubr.bf16.gmra.mrb[0].mxu0 %v1078
        %v1117 = vpop.f32.mrb[0].mxu0
        %v1118 = vadd.f32 0.0, %v1117
        %v1119 = vpop.f32.mrb[0].mxu0
        %v1120 = vpop.f32.mrb[0].mxu0
        %v1121 = vadd.f32 0.0, %v1120
        %v1122 = vpop.f32.mrb[0].mxu0
        %1123 = vdwg.mxu0
        %v1124 = vsel %vm991, %v1118, -inf
        %1125 = vmax.xlane.f32.xlu0 %v1124
        %v1126 = vpop.xlane.xlu0 %1125
        %v1127 = vsel %vm991, %v1121, -inf
        %1128 = vmax.xlane.f32.xlu0 %v1127
        %v1129 = vpop.xlane.xlu0 %1128
        %v1130 = vsub.f32 %v1118, %v1126
        %v1131 = vsub.f32 %v1121, %v1129
        %v1132 = vmul.f32 %v1130, 1.442695
        %v1133 = vpow.pop %v1132
        %v1134 = vmul.f32 %v1131, 1.442695
        %v1135 = vpow.pop %v1134
        %v1136 = vsel %vm991, %v1133, 0.0
        %1137 = vadd.xlane.f32.xlu0 %v1136
        %v1138 = vpop.xlane.xlu0 %1137
        %v1139 = vsel %vm991, %v1135, 0.0
        %1140 = vadd.xlane.f32.xlu0 %v1139
        %v1141 = vpop.xlane.xlu0 %1140
        %v1142 = vrcp.pop %v1138
        %v1143 = vrcp.pop %v1141
        %v1144 = vmul.f32 %v1133, %v1142
        %v1145 = vmul.f32 %v1135, %v1143
        %v1146 = vpack.c.bf16 %v1145, %v1144
        %1147 = vrot.lane.b32.xlu0 %v787, 16
        %v1148 = vpop.permute.xlu0 %1147
        %v1150 = vsel %vm991, %v1146, 0
        %v1153 = vsel %vm1020, %v1148, 0
        %1155 = vmatprep.subr.bf16.mxu0 0
        %1156 = vmatpush1.bf16.msra.mxu0 %v1153
        %1157 = vmatprep.subr.bf16.mxu0 0
        %1158 = vmatpush1.bf16.msra.mxu0 0
        %1159 = vmatprep.subr.bf16.mxu0 0
        %1160 = vmatpush1.bf16.msra.mxu0 0
        %1161 = vmatprep.subr.bf16.mxu0 0
        %1162 = vmatpush1.bf16.msra.mxu0 0
        %1163 = vmatprep.subr.bf16.mxu0 0
        %1164 = vmatpush1.bf16.msra.mxu0 0
        %1165 = vmatprep.subr.bf16.mxu0 0
        %1166 = vmatpush1.bf16.msra.mxu0 0
        %1167 = vmatprep.subr.bf16.mxu0 0
        %1168 = vmatpush1.bf16.msra.mxu0 0
        %1169 = vmatprep.subr.bf16.mxu0 0
        %1170 = vmatpush1.bf16.msra.mxu0 0
        %1171 = vmatprep.subr.bf16.mxu0 0
        %1172 = vmatpush1.bf16.msra.mxu0 0
        %1173 = vmatprep.subr.bf16.mxu0 0
        %1174 = vmatpush1.bf16.msra.mxu0 0
        %1175 = vmatprep.subr.bf16.mxu0 0
        %1176 = vmatpush1.bf16.msra.mxu0 0
        %1177 = vmatprep.subr.bf16.mxu0 0
        %1178 = vmatpush1.bf16.msra.mxu0 0
        %1179 = vmatprep.subr.bf16.mxu0 0
        %1180 = vmatpush1.bf16.msra.mxu0 0
        %1181 = vmatprep.subr.bf16.mxu0 0
        %1182 = vmatpush1.bf16.msra.mxu0 0
        %1183 = vmatprep.subr.bf16.mxu0 0
        %1184 = vmatpush1.bf16.msra.mxu0 0
        %1185 = vmatprep.subr.bf16.mxu0 0
        %1186 = vmatpush1.bf16.msra.mxu0 0
        %1187 = vmatprep.mubr.bf16.mxu0 0
        %1188 = vmatmul.mubr.bf16.gmra.mrb[0].mxu0 %v1150
        %v1189 = vpop.f32.mrb[0].mxu0
        %v1190 = vadd.f32 0.0, %v1189
        %v1191 = vpop.f32.mrb[0].mxu0
        %v1192 = vpop.f32.mrb[0].mxu0
        %v1193 = vadd.f32 0.0, %v1192
        %v1194 = vpop.f32.mrb[0].mxu0
        %1195 = vdwg.mxu0
        %1197 = vrot.lane.b32.xlu0 %v1190, 32
        %v1198 = vpop.permute.xlu0 %1197
        %vm1200 = vcmask 392448
        %1201 = vst.msk [vmem:[#allocation2] sm:$0xff] %vm1200, %v1198
        %1203 = vrot.lane.b32.xlu0 %v1193, 48
        %v1204 = vpop.permute.xlu0 %1203
        %vm1206 = vcmask 523648
        %1207 = vst.msk [vmem:[#allocation2] sm:$0xff] %vm1206, %v1204
        %v1208 = vld [vmem:[%s12] sm:$0x1]
        %v1210 = vlaneseq
        %v1211 = vshrl.u32 %v1210, 7
        %v1212 = vsub.s32 0, %v1211
        %v1213 = vrot.slane %v1208, %v1212
        %v1215 = vadd.f32 %v662, %v1213
        %v1216 = vld [vmem:[#allocation2] sm:$0xff]
        %v1217 = vld [vmem:[%s11] sm:$0xf]
        %v1218 = vld [vmem:[%s11 + $0x4] sm:$0xf]
        %v1219 = vld [vmem:[%s11 + $0x8] sm:$0xf]
        %v1220 = vld [vmem:[%s11 + $0xc] sm:$0xf]
        %v1221 = vld [vmem:[%s11 + $0x10] sm:$0xf]
        %v1222 = vld [vmem:[%s11 + $0x14] sm:$0xf]
        %v1223 = vld [vmem:[%s11 + $0x18] sm:$0xf]
        %v1224 = vld [vmem:[%s11 + $0x1c] sm:$0xf]
        %v1225 = vpack.c.bf16 %v1216, %v1216
        %v1234 = vunpack.c.l.b16 %v1217
        %v1235 = vunpack.c.l.b16 %v1218
        %v1236 = vunpack.c.l.b16 %v1219
        %v1237 = vunpack.c.l.b16 %v1220
        %v1238 = vunpack.c.l.b16 %v1221
        %v1239 = vunpack.c.l.b16 %v1222
        %v1240 = vunpack.c.l.b16 %v1223
        %v1241 = vunpack.c.l.b16 %v1224
        %v1242 = vpack.c.b16 %v1235, %v1234
        %v1243 = vpack.c.b16 %v1237, %v1236
        %v1244 = vpack.c.b16 %v1239, %v1238
        %v1245 = vpack.c.b16 %v1241, %v1240
        %v1251 = vsel %vm663, %v1225, 0
        %1253 = vmatprep.subr.bf16.mxu0 0
        %1254 = vmatpush1.bf16.msra.mxu0 %v1242
        %1255 = vmatprep.subr.bf16.mxu0 0
        %1256 = vmatpush1.bf16.msra.mxu0 %v1243
        %1257 = vmatprep.subr.bf16.mxu0 0
        %1258 = vmatpush1.bf16.msra.mxu0 %v1244
        %1259 = vmatprep.subr.bf16.mxu0 0
        %1260 = vmatpush1.bf16.msra.mxu0 %v1245
        %1261 = vmatprep.subr.bf16.mxu0 0
        %1262 = vmatpush1.bf16.msra.mxu0 0
        %1263 = vmatprep.subr.bf16.mxu0 0
        %1264 = vmatpush1.bf16.msra.mxu0 0
        %1265 = vmatprep.subr.bf16.mxu0 0
        %1266 = vmatpush1.bf16.msra.mxu0 0
        %1267 = vmatprep.subr.bf16.mxu0 0
        %1268 = vmatpush1.bf16.msra.mxu0 0
        %1269 = vmatprep.subr.bf16.mxu0 0
        %1270 = vmatpush1.bf16.msra.mxu0 0
        %1271 = vmatprep.subr.bf16.mxu0 0
        %1272 = vmatpush1.bf16.msra.mxu0 0
        %1273 = vmatprep.subr.bf16.mxu0 0
        %1274 = vmatpush1.bf16.msra.mxu0 0
        %1275 = vmatprep.subr.bf16.mxu0 0
        %1276 = vmatpush1.bf16.msra.mxu0 0
        %1277 = vmatprep.subr.bf16.mxu0 0
        %1278 = vmatpush1.bf16.msra.mxu0 0
        %1279 = vmatprep.subr.bf16.mxu0 0
        %1280 = vmatpush1.bf16.msra.mxu0 0
        %1281 = vmatprep.subr.bf16.mxu0 0
        %1282 = vmatpush1.bf16.msra.mxu0 0
        %1283 = vmatprep.subr.bf16.mxu0 0
        %1284 = vmatpush1.bf16.msra.mxu0 0
        %1285 = vmatprep.mubr.bf16.mxu0 0
        %1286 = vmatmul.mubr.bf16.gmra.mrb[0].mxu0 %v1251
        %v1287 = vpop.f32.mrb[0].mxu0
        %v1288 = vadd.f32 0.0, %v1287
        %v1289 = vpop.f32.mrb[0].mxu0
        %v1290 = vpop.f32.mrb[0].mxu0
        %v1291 = vpop.f32.mrb[0].mxu0
        %1292 = vdwg.mxu0
        %v1293 = vadd.f32 %v1215, %v1288
        %v1294 = vsel %vm663, %v1293, 0.0
        %1295 = vadd.xlane.f32.xlu0 %v1294
        %v1296 = vpop.xlane.xlu0 %1295
        %v1297 = vmul.f32 %v1296, %v667
        %v1298 = vsub.f32 %v1293, %v1297
        %v1299 = vmul.f32 %v1298, %v1298
        %v1300 = vsel %vm663, %v1299, 0.0
        %1301 = vadd.xlane.f32.xlu0 %v1300
        %v1302 = vpop.xlane.xlu0 %1301
        %v1303 = vmul.f32 %v1302, %v667
        %v1304 = vadd.f32 %v1303, 1e-05
        %v1305 = vrsqrt.pop %v1304
        %v1306 = vmul.f32 %v1298, %v1305
        %v1307 = vld [vmem:[#allocation8] sm:$0x1]
        %v1309 = vlaneseq
        %v1310 = vshrl.u32 %v1309, 7
        %v1311 = vsub.s32 0, %v1310
        %v1312 = vrot.slane %v1307, %v1311
        %v1314 = vmul.f32 %v1306, %v1312
        %v1315 = vld [vmem:[#allocation9] sm:$0x1]
        %v1317 = vlaneseq
        %v1318 = vshrl.u32 %v1317, 7
        %v1319 = vsub.s32 0, %v1318
        %v1320 = vrot.slane %v1315, %v1319
        %v1322 = vadd.f32 %v1314, %v1320
        %v1323 = vld [vmem:[%s15] sm:$0xff]
        %v1324 = vld [vmem:[%s15 + $0x8] sm:$0xff]
        %v1325 = vld [vmem:[%s15 + $0x10] sm:$0xff]
        %v1326 = vld [vmem:[%s15 + $0x18] sm:$0xff]
        %v1327 = vld [vmem:[%s15 + $0x20] sm:$0xff]
        %v1328 = vld [vmem:[%s15 + $0x28] sm:$0xff]
        %v1329 = vld [vmem:[%s15 + $0x30] sm:$0xff]
        %v1330 = vld [vmem:[%s15 + $0x38] sm:$0xff]
        %v1331 = vld [vmem:[%s16] sm:$0x3]
        %v1332 = vpack.c.bf16 %v1322, %v1322
        %v1334 = vlaneseq
        %v1335 = vshrl.u32 %v1334, 7
        %v1336 = vsub.s32 0, %v1335
        %v1337 = vrot.slane %v1331, %v1336
        %v1338 = vlaneseq
        %v1339 = vshrl.u32 %v1338, 7
        %v1340 = vsub.s32 1, %v1339
        %v1341 = vrot.slane %v1331, %v1340
        %v1352 = vunpack.c.l.b16 %v1323
        %v1353 = vunpack.c.h.b16 %v1323
        %v1354 = vunpack.c.l.b16 %v1324
        %v1355 = vunpack.c.h.b16 %v1324
        %v1356 = vunpack.c.l.b16 %v1325
        %v1357 = vunpack.c.h.b16 %v1325
        %v1358 = vunpack.c.l.b16 %v1326
        %v1359 = vunpack.c.h.b16 %v1326
        %v1360 = vunpack.c.l.b16 %v1327
        %v1361 = vunpack.c.h.b16 %v1327
        %v1362 = vunpack.c.l.b16 %v1328
        %v1363 = vunpack.c.h.b16 %v1328
        %v1364 = vunpack.c.l.b16 %v1329
        %v1365 = vunpack.c.h.b16 %v1329
        %v1366 = vunpack.c.l.b16 %v1330
        %v1367 = vunpack.c.h.b16 %v1330
        %v1368 = vpack.c.b16 %v1354, %v1352
        %v1369 = vpack.c.b16 %v1355, %v1353
        %v1370 = vpack.c.b16 %v1358, %v1356
        %v1371 = vpack.c.b16 %v1359, %v1357
        %v1372 = vpack.c.b16 %v1362, %v1360
        %v1373 = vpack.c.b16 %v1363, %v1361
        %v1374 = vpack.c.b16 %v1366, %v1364
        %v1375 = vpack.c.b16 %v1367, %v1365
        %v1385 = vsel %vm663, %v1332, 0
        %1387 = vmatprep.subr.bf16.mxu0 %v1369
        %1388 = vmatpush1.bf16.msra.mxu0 %v1368
        %1389 = vmatprep.subr.bf16.mxu0 %v1371
        %1390 = vmatpush1.bf16.msra.mxu0 %v1370
        %1391 = vmatprep.subr.bf16.mxu0 %v1373
        %1392 = vmatpush1.bf16.msra.mxu0 %v1372
        %1393 = vmatprep.subr.bf16.mxu0 %v1375
        %1394 = vmatpush1.bf16.msra.mxu0 %v1374
        %1395 = vmatprep.subr.bf16.mxu0 0
        %1396 = vmatpush1.bf16.msra.mxu0 0
        %1397 = vmatprep.subr.bf16.mxu0 0
        %1398 = vmatpush1.bf16.msra.mxu0 0
        %1399 = vmatprep.subr.bf16.mxu0 0
        %1400 = vmatpush1.bf16.msra.mxu0 0
        %1401 = vmatprep.subr.bf16.mxu0 0
        %1402 = vmatpush1.bf16.msra.mxu0 0
        %1403 = vmatprep.subr.bf16.mxu0 0
        %1404 = vmatpush1.bf16.msra.mxu0 0
        %1405 = vmatprep.subr.bf16.mxu0 0
        %1406 = vmatpush1.bf16.msra.mxu0 0
        %1407 = vmatprep.subr.bf16.mxu0 0
        %1408 = vmatpush1.bf16.msra.mxu0 0
        %1409 = vmatprep.subr.bf16.mxu0 0
        %1410 = vmatpush1.bf16.msra.mxu0 0
        %1411 = vmatprep.subr.bf16.mxu0 0
        %1412 = vmatpush1.bf16.msra.mxu0 0
        %1413 = vmatprep.subr.bf16.mxu0 0
        %1414 = vmatpush1.bf16.msra.mxu0 0
        %1415 = vmatprep.subr.bf16.mxu0 0
        %1416 = vmatpush1.bf16.msra.mxu0 0
        %1417 = vmatprep.subr.bf16.mxu0 0
        %1418 = vmatpush1.bf16.msra.mxu0 0
        %1419 = vmatprep.mubr.bf16.mxu0 0
        %1420 = vmatmul.mubr.bf16.gmra.mrb[0].mxu0 %v1385
        %v1421 = vpop.f32.mrb[0].mxu0
        %v1422 = vadd.f32 %v1337, %v1421
        %v1423 = vpop.f32.mrb[0].mxu0
        %v1424 = vadd.f32 %v1341, %v1423
        %v1425 = vpop.f32.mrb[0].mxu0
        %v1426 = vpop.f32.mrb[0].mxu0
        %1427 = vdwg.mxu0
        %v1428 = vmul.f32 %v1422, %v1422
        %v1429 = vmul.f32 %v1424, %v1424
        %v1430 = vmul.f32 %v1422, %v1428
        %v1431 = vmul.f32 %v1424, %v1429
        %v1432 = vmul.f32 %v1430, 0.044715
        %v1433 = vmul.f32 %v1431, 0.044715
        %v1434 = vadd.f32 %v1422, %v1432
        %v1435 = vadd.f32 %v1424, %v1433
        %v1436 = vmul.f32 %v1434, 0.7978846
        %v1437 = vmul.f32 %v1435, 0.7978846
        %v1438 = vtanh.pop %v1436
        %v1439 = vtanh.pop %v1437
        %v1440 = vadd.f32 %v1438, 1.0
        %v1441 = vadd.f32 %v1439, 1.0
        %v1442 = vmul.f32 %v1440, 0.5
        %v1443 = vmul.f32 %v1441, 0.5
        %v1444 = vmul.f32 %v1422, %v1442
        %v1445 = vmul.f32 %v1424, %v1443
        %v1446 = vld [vmem:[%s17] sm:$0xf]
        %v1447 = vld [vmem:[%s17 + $0x4] sm:$0xf]
        %v1448 = vld [vmem:[%s17 + $0x8] sm:$0xf]
        %v1449 = vld [vmem:[%s17 + $0xc] sm:$0xf]
        %v1450 = vld [vmem:[%s17 + $0x10] sm:$0xf]
        %v1451 = vld [vmem:[%s17 + $0x14] sm:$0xf]
        %v1452 = vld [vmem:[%s17 + $0x18] sm:$0xf]
        %v1453 = vld [vmem:[%s17 + $0x1c] sm:$0xf]
        %v1454 = vld [vmem:[%s17 + $0x20] sm:$0xf]
        %v1455 = vld [vmem:[%s17 + $0x24] sm:$0xf]
        %v1456 = vld [vmem:[%s17 + $0x28] sm:$0xf]
        %v1457 = vld [vmem:[%s17 + $0x2c] sm:$0xf]
        %v1458 = vld [vmem:[%s17 + $0x30] sm:$0xf]
        %v1459 = vld [vmem:[%s17 + $0x34] sm:$0xf]
        %v1460 = vld [vmem:[%s17 + $0x38] sm:$0xf]
        %v1461 = vld [vmem:[%s17 + $0x3c] sm:$0xf]
        %v1462 = vld [vmem:[%s17 + $0x40] sm:$0xf]
        %v1463 = vld [vmem:[%s17 + $0x44] sm:$0xf]
        %v1464 = vld [vmem:[%s17 + $0x48] sm:$0xf]
        %v1465 = vld [vmem:[%s17 + $0x4c] sm:$0xf]
        %v1466 = vld [vmem:[%s17 + $0x50] sm:$0xf]
        %v1467 = vld [vmem:[%s17 + $0x54] sm:$0xf]
        %v1468 = vld [vmem:[%s17 + $0x58] sm:$0xf]
        %v1469 = vld [vmem:[%s17 + $0x5c] sm:$0xf]
        %v1470 = vld [vmem:[%s17 + $0x60] sm:$0xf]
        %v1471 = vld [vmem:[%s17 + $0x64] sm:$0xf]
        %v1472 = vld [vmem:[%s17 + $0x68] sm:$0xf]
        %v1473 = vld [vmem:[%s17 + $0x6c] sm:$0xf]
        %v1474 = vld [vmem:[%s17 + $0x70] sm:$0xf]
        %v1475 = vld [vmem:[%s17 + $0x74] sm:$0xf]
        %v1476 = vld [vmem:[%s17 + $0x78] sm:$0xf]
        %v1477 = vld [vmem:[%s17 + $0x7c] sm:$0xf]
        %v1478 = vld [vmem:[#allocation11] sm:$0x1]
        %v1479 = vpack.c.bf16 %v1444, %v1444
        %v1480 = vpack.c.bf16 %v1445, %v1445
        %v1482 = vlaneseq
        %v1483 = vshrl.u32 %v1482, 7
        %v1484 = vsub.s32 0, %v1483
        %v1485 = vrot.slane %v1478, %v1484
        %v1519 = vunpack.c.l.b16 %v1446
        %v1520 = vunpack.c.l.b16 %v1447
        %v1521 = vunpack.c.l.b16 %v1448
        %v1522 = vunpack.c.l.b16 %v1449
        %v1523 = vunpack.c.l.b16 %v1450
        %v1524 = vunpack.c.l.b16 %v1451
        %v1525 = vunpack.c.l.b16 %v1452
        %v1526 = vunpack.c.l.b16 %v1453
        %v1527 = vunpack.c.l.b16 %v1454
        %v1528 = vunpack.c.l.b16 %v1455
        %v1529 = vunpack.c.l.b16 %v1456
        %v1530 = vunpack.c.l.b16 %v1457
        %v1531 = vunpack.c.l.b16 %v1458
        %v1532 = vunpack.c.l.b16 %v1459
        %v1533 = vunpack.c.l.b16 %v1460
        %v1534 = vunpack.c.l.b16 %v1461
        %v1535 = vunpack.c.l.b16 %v1462
        %v1536 = vunpack.c.l.b16 %v1463
        %v1537 = vunpack.c.l.b16 %v1464
        %v1538 = vunpack.c.l.b16 %v1465
        %v1539 = vunpack.c.l.b16 %v1466
        %v1540 = vunpack.c.l.b16 %v1467
        %v1541 = vunpack.c.l.b16 %v1468
        %v1542 = vunpack.c.l.b16 %v1469
        %v1543 = vunpack.c.l.b16 %v1470
        %v1544 = vunpack.c.l.b16 %v1471
        %v1545 = vunpack.c.l.b16 %v1472
        %v1546 = vunpack.c.l.b16 %v1473
        %v1547 = vunpack.c.l.b16 %v1474
        %v1548 = vunpack.c.l.b16 %v1475
        %v1549 = vunpack.c.l.b16 %v1476
        %v1550 = vunpack.c.l.b16 %v1477
        %v1551 = vpack.c.b16 %v1520, %v1519
        %v1552 = vpack.c.b16 %v1522, %v1521
        %v1553 = vpack.c.b16 %v1524, %v1523
        %v1554 = vpack.c.b16 %v1526, %v1525
        %v1555 = vpack.c.b16 %v1528, %v1527
        %v1556 = vpack.c.b16 %v1530, %v1529
        %v1557 = vpack.c.b16 %v1532, %v1531
        %v1558 = vpack.c.b16 %v1534, %v1533
        %v1559 = vpack.c.b16 %v1536, %v1535
        %v1560 = vpack.c.b16 %v1538, %v1537
        %v1561 = vpack.c.b16 %v1540, %v1539
        %v1562 = vpack.c.b16 %v1542, %v1541
        %v1563 = vpack.c.b16 %v1544, %v1543
        %v1564 = vpack.c.b16 %v1546, %v1545
        %v1565 = vpack.c.b16 %v1548, %v1547
        %v1566 = vpack.c.b16 %v1550, %v1549
        %1583 = vmatprep.subr.bf16.mxu0 0
        %1584 = vmatpush1.bf16.msra.mxu0 %v1551
        %1585 = vmatprep.subr.bf16.mxu0 0
        %1586 = vmatpush1.bf16.msra.mxu0 %v1552
        %1587 = vmatprep.subr.bf16.mxu0 0
        %1588 = vmatpush1.bf16.msra.mxu0 %v1553
        %1589 = vmatprep.subr.bf16.mxu0 0
        %1590 = vmatpush1.bf16.msra.mxu0 %v1554
        %1591 = vmatprep.subr.bf16.mxu0 0
        %1592 = vmatpush1.bf16.msra.mxu0 %v1555
        %1593 = vmatprep.subr.bf16.mxu0 0
        %1594 = vmatpush1.bf16.msra.mxu0 %v1556
        %1595 = vmatprep.subr.bf16.mxu0 0
        %1596 = vmatpush1.bf16.msra.mxu0 %v1557
        %1597 = vmatprep.subr.bf16.mxu0 0
        %1598 = vmatpush1.bf16.msra.mxu0 %v1558
        %1599 = vmatprep.subr.bf16.mxu0 0
        %1600 = vmatpush1.bf16.msra.mxu0 %v1559
        %1601 = vmatprep.subr.bf16.mxu0 0
        %1602 = vmatpush1.bf16.msra.mxu0 %v1560
        %1603 = vmatprep.subr.bf16.mxu0 0
        %1604 = vmatpush1.bf16.msra.mxu0 %v1561
        %1605 = vmatprep.subr.bf16.mxu0 0
        %1606 = vmatpush1.bf16.msra.mxu0 %v1562
        %1607 = vmatprep.subr.bf16.mxu0 0
        %1608 = vmatpush1.bf16.msra.mxu0 %v1563
        %1609 = vmatprep.subr.bf16.mxu0 0
        %1610 = vmatpush1.bf16.msra.mxu0 %v1564
        %1611 = vmatprep.subr.bf16.mxu0 0
        %1612 = vmatpush1.bf16.msra.mxu0 %v1565
        %1613 = vmatprep.subr.bf16.mxu0 0
        %1614 = vmatpush1.bf16.msra.mxu0 %v1566
        %1615 = vmatprep.mubr.bf16.mxu0 %v1480
        %1616 = vmatmul.mubr.bf16.gmra.mrb[0].mxu0 %v1479
        %v1617 = vpop.f32.mrb[0].mxu0
        %v1618 = vadd.f32 %v1485, %v1617
        %v1619 = vpop.f32.mrb[0].mxu0
        %v1620 = vpop.f32.mrb[0].mxu0
        %v1621 = vpop.f32.mrb[0].mxu0
        %1622 = vdwg.mxu0
        %v1623 = vadd.f32 %v1293, %v1618
        %1624 = vst.msk [vmem:[%s656] sm:$0xff] %vm663, %v1623
        %s1625 = sand.u32 %s448, 1
        %s1626 = scalar_lea.sflag [#allocation5], %s1625
        %s1627 = sand.u32 %s448, 1
        %s1628 = smul.addr %s1627, 8
        %s1629 = scalar_lea.vmem [#allocation12], %s1628
        // Predicated region
        $region117: #{block_forward.1} parent=95 // pred_check
          %p1630 = pneg %p458
        $region118: #{block_forward.1} parent=95 // pred_check_branch
          %1632 = sbr.rel (%p1630) target = $region120
        $region119: #{block_forward.1} parent=95 // pred_region
          %s1634 = ssub.s32 128, 128
          %1635 = vsyncadd %s1626, %s1634
          %s1636 = smul.addr %s36, 128
          %s1637 = scalar_lea.hbm %s19, %s1636
          %s1639 = sshll.u32 %s1629, 4
          %s1640 = int_to_ptr.vmem [resolvable:$true] %s1639
          %1642 = dma.vmem_to_hbm [thread:$0]  %s1640, 128, %s1637, %s1626
        $region120: #{block_forward.1} parent=95 // pred_fallthru
          _
      $region96: #{block_forward.1} parent=5 // pred_fallthru
        _
      %p1643 = scmp.le.s32.totalorder 2, %s31
      // Predicated region
      $region121: #{block_forward.1} parent=5 // pred_check
        %p1644 = pneg %p1643
      $region122: #{block_forward.1} parent=5 // pred_check_branch
        %1646 = sbr.rel (%p1644) target = $region124
      $region123: #{block_forward.1} parent=5 // pred_region
        %s1647 = ssub.s32 %s31, 2
        // Predicated region
        $region125: #{block_forward.1} parent=123 // pred_check
          %p1648 = pneg %p464
        $region126: #{block_forward.1} parent=123 // pred_check_branch
          %1650 = sbr.rel (%p1648) target = $region128
        $region127: #{block_forward.1} parent=123 // pred_region
          %s1651 = sand.u32 %s449, 1
          %s1652 = scalar_lea.sflag [#allocation5], %s1651
          %s1653 = sand.u32 %s449, 1
          %s1654 = smul.addr %s1653, 8
          %s1655 = scalar_lea.vmem [#allocation12], %s1654
          %1656 = dma.done %s1652, 128
        $region128: #{block_forward.1} parent=123 // pred_fallthru
          _
      $region124: #{block_forward.1} parent=5 // pred_fallthru
        _
    $region6: #{block_forward.1} parent=1 // loop_footer
      %s35 = sadd.s32 1, %s31
    $region7: #{block_forward.1} parent=1 // loop_footer_branch
      %30 = sbr.rel target = $region3
    $region8: #{block_forward.1} parent=1 // loop_exit
      _
    %1657 = vsyncpa [#allocation4], 1
    %s1658 = scalar_lea.sflag [#allocation4], 1
    %1659 = vsyncpa %s1658, 1
    %1660 = vsyncpa [#allocation7], 1
    %1661 = vsyncpa [#allocation10], 1
    %1662 = vsyncpa [#allocation5], 1
    %s1663 = scalar_lea.sflag [#allocation5], 1
    %1664 = vsyncpa %s1663, 1

</llo_original>
